<compile_context>
chip_gen: v7x
topology: tpu7x:2x2x1
jax: 0.10.0
libtpu: 0.0.40
codegen_flags: <defaults>
</compile_context>

<pallas_src>
import functools

import jax
import jax.numpy as jnp
from jax import lax
from jax.experimental import pallas as pl
from jax.experimental.pallas import tpu as pltpu


def _ce_dice_partial_kernel(x_ref, t_ref, ce_ref, it_ref, *, ncls, fold, n_rows):
    """One grid step: per-tile partial sums of CE terms and dice intersections.

    x_ref: (row_tile, fold*ncls) logits tile (fold original rows per kernel row)
    t_ref: (row_tile, fold) int32 targets
    ce_ref/it_ref: (1, 1, 1) f32 per-tile partial outputs
    """
    tn, F = x_ref.shape                      # F == fold * ncls
    i = pl.program_id(0)

    x = x_ref[...].astype(jnp.float32)       # (tn, F)
    t = t_ref[...]                           # (tn, fold) int32

    # Constant 0/1 segment selector (F, fold) and its transpose, built from
    # iota + range compares (no vector integer div/mod needed).
    j_f = lax.broadcasted_iota(jnp.int32, (F, fold), 0)
    s_f = lax.broadcasted_iota(jnp.int32, (F, fold), 1)
    lo_f = s_f * ncls
    sel = ((j_f >= lo_f) & (j_f < lo_f + ncls)).astype(jnp.float32)    # (F, fold)
    s_t = lax.broadcasted_iota(jnp.int32, (fold, F), 0)
    j_t = lax.broadcasted_iota(jnp.int32, (fold, F), 1)
    lo_t = s_t * ncls
    sel_t = ((j_t >= lo_t) & (j_t < lo_t + ncls)).astype(jnp.float32)  # (fold, F)

    # Target one-hot over the folded lane axis: broadcast (target + seg*C) to
    # every lane of its segment via a selector matmul (exact small-int math
    # with HIGHEST precision), compare against the lane index.
    seg_ids = lax.broadcasted_iota(jnp.int32, (tn, fold), 1)
    tgt_global = (t + seg_ids * ncls).astype(jnp.float32)              # (tn, fold)
    tgt_lane = jnp.dot(tgt_global, sel_t,
                       precision=lax.Precision.HIGHEST)                # (tn, F)
    lane_ids = lax.broadcasted_iota(jnp.int32, (tn, F), 1).astype(jnp.float32)
    onehot = lane_ids == tgt_lane                                      # (tn, F) bool

    # Target logit per original row: masked sum -> segmented sum on the MXU.
    x_t = jnp.dot(jnp.where(onehot, x, 0.0), sel,
                  precision=lax.Precision.HIGHEST)                     # (tn, fold)

    # Online-softmax statistics: dense exp over all lanes, segmented sum-exp.
    m = jnp.max(x, axis=1, keepdims=True)                              # (tn, 1)
    e = jnp.exp(x - m)                                                 # (tn, F)
    s_seg = jnp.dot(e, sel, precision=lax.Precision.HIGHEST)           # (tn, fold)
    lse = m + jnp.log(jnp.maximum(s_seg, jnp.float32(1e-37)))
    lse = jnp.maximum(lse, x_t)          # lse >= x_t always holds mathematically

    ce_rows = lse - x_t                                                # per-row CE
    it_rows = jnp.exp(x_t - lse)                                       # softmax[t]

    # Row validity for the (possibly partial) last grid block.  jnp.where (not
    # a multiply) so garbage in the un-DMA'd region can never make NaN.
    row_ids = i * tn + lax.broadcasted_iota(jnp.int32, (tn, fold), 0)
    valid = row_ids < n_rows
    ce_rows = jnp.where(valid, ce_rows, 0.0)
    it_rows = jnp.where(valid, it_rows, 0.0)

    ce_ref[...] = jnp.broadcast_to(jnp.sum(ce_rows), (1, 1, 1))
    it_ref[...] = jnp.broadcast_to(jnp.sum(it_rows), (1, 1, 1))


def _fused_partial_sums(x2d, t2d, ncls, fold, row_tile=None):
    """Run the fused kernel over a folded [rows, fold*ncls] slab.

    Returns (sum of per-row CE terms, sum of per-row softmax[target]) as f32
    scalars; the trivial combine happens in the caller (plain JAX) so the grid
    axis can be "parallel" (v7x dual-core).
    """
    G, F = x2d.shape
    assert F == ncls * fold
    itemsize = jnp.dtype(x2d.dtype).itemsize
    lanes = ((F + 127) // 128) * 128

    if row_tile is None:
        # ~2 MiB of logits per pipeline buffer, sized from the true itemsize
        # (bf16 gets 2x rows per DMA for the same bytes).
        row_tile = (2 * 1024 * 1024) // (lanes * itemsize)
        row_tile = min(row_tile, 4096)
    if G <= 8:
        row_tile = G                         # single block, block dims == array dims
    else:
        row_tile = max(8, min((row_tile // 8) * 8, (G // 8) * 8))
    num_tiles = pl.cdiv(G, row_tile)

    kernel = functools.partial(_ce_dice_partial_kernel,
                               ncls=ncls, fold=fold, n_rows=G)
    cost = pl.CostEstimate(
        flops=int(6 * G * F * fold + 8 * G * F),
        transcendentals=int(G * F + 2 * G * fold),
        bytes_accessed=int(G * F * itemsize + G * fold * 4 + num_tiles * 8),
    )

    ce_p, it_p = pl.pallas_call(
        kernel,
        out_shape=(jax.ShapeDtypeStruct((num_tiles, 1, 1), jnp.float32),
                   jax.ShapeDtypeStruct((num_tiles, 1, 1), jnp.float32)),
        grid=(num_tiles,),
        in_specs=[
            pl.BlockSpec((row_tile, F), lambda i: (i, 0)),      # folded logits
            pl.BlockSpec((row_tile, fold), lambda i: (i, 0)),   # folded targets
        ],
        out_specs=(
            pl.BlockSpec((1, 1, 1), lambda i: (i, 0, 0)),       # CE partials
            pl.BlockSpec((1, 1, 1), lambda i: (i, 0, 0)),       # intersection partials
        ),
        compiler_params=pltpu.CompilerParams(
            dimension_semantics=("parallel",),   # no carried state -> megacore-splittable
            vmem_limit_bytes=32 * 1024 * 1024,
        ),
        cost_estimate=cost,
    )(x2d, t2d)
    return jnp.sum(ce_p), jnp.sum(it_p)


def custom_loss(inputs, targets, smooth=1e-6, row_tile=None):
    """inputs: [N, C] float logits; targets: [N] integer class ids -> scalar loss."""
    N, C = inputs.shape
    x = inputs if inputs.dtype in (jnp.bfloat16, jnp.float32) \
        else inputs.astype(jnp.float32)
    t = targets.astype(jnp.int32)

    # Lane folding factor: pack `fold` consecutive rows into one kernel row so
    # the 128-lane vregs are dense even for tiny C.  Free reshape (no HBM copy)
    # when N is a multiple of fold; otherwise the < fold leftover rows are run
    # through the same kernel unfolded.
    fold = max(1, min(128 // C, N)) if C <= 128 else 1
    n_main = (N // fold) * fold

    parts = []
    if n_main:
        xm = x if n_main == N else x[:n_main]
        tm = t if n_main == N else t[:n_main]
        parts.append(_fused_partial_sums(
            xm.reshape(n_main // fold, fold * C),
            tm.reshape(n_main // fold, fold),
            C, fold, row_tile))
    if n_main != N:
        rem = N - n_main                      # < fold <= 128 rows: one tiny call
        parts.append(_fused_partial_sums(
            x[n_main:].reshape(rem, C),
            t[n_main:].reshape(rem, 1),
            C, 1, None))

    ce_sum = sum(p[0] for p in parts)
    it_sum = sum(p[1] for p in parts)

    nf = jnp.float32(N)
    ce = ce_sum / nf
    # sum(softmax rows) == N and sum(one_hot) == N (one 1 per valid row).
    dice_score = (2.0 * it_sum + smooth) / (nf + nf + smooth)
    return ce + (1.0 - dice_score)


def _custom_loss_ref(inputs, targets, smooth=1e-6):
    # Pure-JAX port of the PyTorch CustomLoss, for sanity checking.
    x = inputs.astype(jnp.float32)
    n, c = x.shape
    lse = jax.nn.logsumexp(x, axis=1)
    x_t = jnp.take_along_axis(x, targets.astype(jnp.int32)[:, None], axis=1)[:, 0]
    ce = jnp.mean(lse - x_t)
    probs = jax.nn.softmax(x, axis=1)
    onehot = jax.nn.one_hot(targets, c, dtype=jnp.float32)
    inter = jnp.sum(probs * onehot)
    dice = (2.0 * inter + smooth) / (jnp.sum(probs) + jnp.sum(onehot) + smooth)
    return ce + (1.0 - dice)


if __name__ == "__main__":
    key = jax.random.PRNGKey(0)
    k1, k2, k3, k4, k5, k6, k7, k8 = jax.random.split(key, 8)

    # Case 1: the module's usage-example shape (5 rows, 3 classes) -> fully
    # lane-folded into a single (1, 15) kernel row.
    x1 = jax.random.normal(k1, (5, 3), dtype=jnp.float32)
    t1 = jax.random.randint(k2, (5,), 0, 3, dtype=jnp.int32)
    l1 = jax.block_until_ready(custom_loss(x1, t1))
    r1 = _custom_loss_ref(x1, t1)
    assert jnp.allclose(l1, r1, atol=1e-5, rtol=1e-5), (l1, r1)

    # Case 2: folded path (fold=4) + ragged 1-row tail + forced small row tile
    # -> multi-tile "parallel" grid with a partial last block.
    x2 = jax.random.normal(k3, (37, 32), dtype=jnp.float32)
    t2 = jax.random.randint(k4, (37,), 0, 32, dtype=jnp.int32)
    l2 = jax.block_until_ready(custom_loss(x2, t2, row_tile=8))
    r2 = _custom_loss_ref(x2, t2)
    assert jnp.allclose(l2, r2, atol=1e-5, rtol=1e-5), (l2, r2)

    # Case 3: bf16 logits, larger batch, tiny class count (fold=42), default tiling.
    x3 = jax.random.normal(k5, (1024, 3), dtype=jnp.float32).astype(jnp.bfloat16)
    t3 = jax.random.randint(k6, (1024,), 0, 3, dtype=jnp.int32)
    l3 = jax.block_until_ready(custom_loss(x3, t3))
    r3 = _custom_loss_ref(x3, t3)
    assert jnp.allclose(l3, r3, atol=1e-4, rtol=1e-4), (l3, r3)

    # Case 4: C > 128 -> no folding, multi-tile grid with a partial last block.
    x4 = jax.random.normal(k7, (40, 160), dtype=jnp.float32)
    t4 = jax.random.randint(k8, (40,), 0, 160, dtype=jnp.int32)
    l4 = jax.block_until_ready(custom_loss(x4, t4, row_tile=16))
    r4 = _custom_loss_ref(x4, t4)
    assert jnp.allclose(l4, r4, atol=1e-5, rtol=1e-5), (l4, r4)

    print("KERNEL_OK")
</pallas_src>

<mosaic_0001>
module attributes {stable_mosaic.version = 11 : i64} {
  func.func @_ce_dice_partial_kernel(%arg0: i32, %arg1: memref<1x15xf32, #tpu.memory_space<vmem>>, %arg2: memref<1x5xi32, #tpu.memory_space<vmem>>, %arg3: memref<1x1x1xf32, #tpu.memory_space<vmem>>, %arg4: memref<1x1x1xf32, #tpu.memory_space<vmem>>) attributes {dimension_semantics = [#tpu.dimension_semantics<parallel>], iteration_bounds = array<i64: 1>, scalar_prefetch = 0 : i64, scratch_operands = 0 : i64, tpu.core_type = #tpu.core_type<tc>, window_params = [{transform_indices = @transform_0, window_bounds = array<i64: 1, 15>}, {transform_indices = @transform_1, window_bounds = array<i64: 1, 5>}, {transform_indices = @transform_2, window_bounds = array<i64: 1, 1, 1>}, {transform_indices = @transform_3, window_bounds = array<i64: 1, 1, 1>}]} {
    %c0 = arith.constant 0 : index
    %c0_0 = arith.constant 0 : index
    %0 = vector.load %arg1[%c0, %c0_0] : memref<1x15xf32, #tpu.memory_space<vmem>>, vector<1x15xf32>
    %c0_1 = arith.constant 0 : index
    %c0_2 = arith.constant 0 : index
    %1 = vector.load %arg2[%c0_1, %c0_2] : memref<1x5xi32, #tpu.memory_space<vmem>>, vector<1x5xi32>
    %2 = tpu.iota {dimensions = array<i32: 0>} : vector<15x5xi32>
    %3 = tpu.iota {dimensions = array<i32: 1>} : vector<15x5xi32>
    %c3_i32 = arith.constant 3 : i32
    %4 = vector.broadcast %c3_i32 : i32 to vector<15x5xi32>
    %5 = arith.muli %3, %4 : vector<15x5xi32>
    %6 = arith.cmpi sge, %2, %5 : vector<15x5xi32>
    %c3_i32_3 = arith.constant 3 : i32
    %7 = vector.broadcast %c3_i32_3 : i32 to vector<15x5xi32>
    %8 = arith.addi %5, %7 : vector<15x5xi32>
    %9 = arith.cmpi slt, %2, %8 : vector<15x5xi32>
    %10 = arith.andi %6, %9 : vector<15x5xi1>
    %11 = arith.extui %10 : vector<15x5xi1> to vector<15x5xi32>
    %12 = arith.sitofp %11 : vector<15x5xi32> to vector<15x5xf32>
    %13 = tpu.iota {dimensions = array<i32: 0>} : vector<5x15xi32>
    %14 = tpu.iota {dimensions = array<i32: 1>} : vector<5x15xi32>
    %c3_i32_4 = arith.constant 3 : i32
    %15 = vector.broadcast %c3_i32_4 : i32 to vector<5x15xi32>
    %16 = arith.muli %13, %15 : vector<5x15xi32>
    %17 = arith.cmpi sge, %14, %16 : vector<5x15xi32>
    %c3_i32_5 = arith.constant 3 : i32
    %18 = vector.broadcast %c3_i32_5 : i32 to vector<5x15xi32>
    %19 = arith.addi %16, %18 : vector<5x15xi32>
    %20 = arith.cmpi slt, %14, %19 : vector<5x15xi32>
    %21 = arith.andi %17, %20 : vector<5x15xi1>
    %22 = arith.extui %21 : vector<5x15xi1> to vector<5x15xi32>
    %23 = arith.sitofp %22 : vector<5x15xi32> to vector<5x15xf32>
    %24 = tpu.iota {dimensions = array<i32: 1>} : vector<1x5xi32>
    %c3_i32_6 = arith.constant 3 : i32
    %25 = vector.broadcast %c3_i32_6 : i32 to vector<1x5xi32>
    %26 = arith.muli %24, %25 : vector<1x5xi32>
    %27 = arith.addi %1, %26 : vector<1x5xi32>
    %28 = arith.sitofp %27 : vector<1x5xi32> to vector<1x5xf32>
    %cst = arith.constant dense<0.000000e+00> : vector<1x15xf32>
    %29 = tpu.matmul %28, %23, %cst {dimension_numbers = #tpu.dot_dimension_numbers<[1], [0], [0], [1], [0, 0, 1, 1], [], []>, precision = #tpu.contract_precision<fp32>} : vector<1x5xf32>, vector<5x15xf32>, vector<1x15xf32> -> vector<1x15xf32>
    %30 = tpu.iota {dimensions = array<i32: 1>} : vector<1x15xi32>
    %31 = arith.sitofp %30 : vector<1x15xi32> to vector<1x15xf32>
    %32 = arith.cmpf oeq, %31, %29 : vector<1x15xf32>
    %cst_7 = arith.constant 0.000000e+00 : f32
    %33 = vector.broadcast %cst_7 : f32 to vector<1x15xf32>
    %34 = arith.select %32, %0, %33 : vector<1x15xi1>, vector<1x15xf32>
    %cst_8 = arith.constant dense<0.000000e+00> : vector<1x5xf32>
    %35 = tpu.matmul %34, %12, %cst_8 {dimension_numbers = #tpu.dot_dimension_numbers<[1], [0], [0], [1], [0, 0, 1, 1], [], []>, precision = #tpu.contract_precision<fp32>} : vector<1x15xf32>, vector<15x5xf32>, vector<1x5xf32> -> vector<1x5xf32>
    %cst_9 = arith.constant dense<0xFF800000> : vector<1xf32>
    %36 = vector.multi_reduction <maximumf>, %0, %cst_9 [1] : vector<1x15xf32> to vector<1xf32>
    %37 = vector.shape_cast %36 : vector<1xf32> to vector<1x1xf32>
    %38 = vector.broadcast %37 : vector<1x1xf32> to vector<1x15xf32>
    %39 = arith.subf %0, %38 : vector<1x15xf32>
    %40 = math.exp %39 : vector<1x15xf32>
    %cst_10 = arith.constant dense<0.000000e+00> : vector<1x5xf32>
    %41 = tpu.matmul %40, %12, %cst_10 {dimension_numbers = #tpu.dot_dimension_numbers<[1], [0], [0], [1], [0, 0, 1, 1], [], []>, precision = #tpu.contract_precision<fp32>} : vector<1x15xf32>, vector<15x5xf32>, vector<1x5xf32> -> vector<1x5xf32>
    %cst_11 = arith.constant 9.99999991E-38 : f32
    %42 = vector.broadcast %cst_11 : f32 to vector<1x5xf32>
    %43 = arith.maximumf %41, %42 : vector<1x5xf32>
    %44 = math.log %43 : vector<1x5xf32>
    %45 = vector.broadcast %37 : vector<1x1xf32> to vector<1x5xf32>
    %46 = arith.addf %45, %44 : vector<1x5xf32>
    %47 = arith.maximumf %46, %35 : vector<1x5xf32>
    %48 = arith.subf %47, %35 : vector<1x5xf32>
    %49 = arith.subf %35, %47 : vector<1x5xf32>
    %50 = math.exp %49 : vector<1x5xf32>
    %c1_i32 = arith.constant 1 : i32
    %51 = arith.muli %arg0, %c1_i32 : i32
    %52 = tpu.iota {dimensions = array<i32: 0>} : vector<1x5xi32>
    %53 = vector.broadcast %51 : i32 to vector<1x5xi32>
    %54 = arith.addi %53, %52 : vector<1x5xi32>
    %c1_i32_12 = arith.constant 1 : i32
    %55 = vector.broadcast %c1_i32_12 : i32 to vector<1x5xi32>
    %56 = arith.cmpi slt, %54, %55 : vector<1x5xi32>
    %cst_13 = arith.constant 0.000000e+00 : f32
    %57 = vector.broadcast %cst_13 : f32 to vector<1x5xf32>
    %58 = arith.select %56, %48, %57 : vector<1x5xi1>, vector<1x5xf32>
    %cst_14 = arith.constant 0.000000e+00 : f32
    %59 = vector.broadcast %cst_14 : f32 to vector<1x5xf32>
    %60 = arith.select %56, %50, %59 : vector<1x5xi1>, vector<1x5xf32>
    %61 = vector.shape_cast %58 : vector<1x5xf32> to vector<1x1x5xf32>
    %cst_15 = arith.constant dense<0.000000e+00> : vector<1xf32>
    %62 = vector.multi_reduction <add>, %61, %cst_15 [1, 2] : vector<1x1x5xf32> to vector<1xf32>
    %63 = vector.shape_cast %62 : vector<1xf32> to vector<1x1x1xf32>
    %64 = vector.extract %63[0, 0, 0] : f32 from vector<1x1x1xf32>
    %65 = vector.broadcast %64 : f32 to vector<1x1x1xf32>
    %c0_16 = arith.constant 0 : index
    %c0_17 = arith.constant 0 : index
    %c0_18 = arith.constant 0 : index
    %66 = vector.load %arg3[%c0_16, %c0_17, %c0_18] : memref<1x1x1xf32, #tpu.memory_space<vmem>>, vector<1x1x1xf32>
    tpu.vector_store %arg3[%c0_16, %c0_17, %c0_18], %65 {strides = array<i32>} : memref<1x1x1xf32, #tpu.memory_space<vmem>>, vector<1x1x1xf32>,
    %67 = vector.shape_cast %60 : vector<1x5xf32> to vector<1x1x5xf32>
    %cst_19 = arith.constant dense<0.000000e+00> : vector<1xf32>
    %68 = vector.multi_reduction <add>, %67, %cst_19 [1, 2] : vector<1x1x5xf32> to vector<1xf32>
    %69 = vector.shape_cast %68 : vector<1xf32> to vector<1x1x1xf32>
    %70 = vector.extract %69[0, 0, 0] : f32 from vector<1x1x1xf32>
    %71 = vector.broadcast %70 : f32 to vector<1x1x1xf32>
    %c0_20 = arith.constant 0 : index
    %c0_21 = arith.constant 0 : index
    %c0_22 = arith.constant 0 : index
    %72 = vector.load %arg4[%c0_20, %c0_21, %c0_22] : memref<1x1x1xf32, #tpu.memory_space<vmem>>, vector<1x1x1xf32>
    tpu.vector_store %arg4[%c0_20, %c0_21, %c0_22], %71 {strides = array<i32>} : memref<1x1x1xf32, #tpu.memory_space<vmem>>, vector<1x1x1xf32>,
    return
  }
  func.func @transform_0(%arg0: i32) -> (i32, i32) {
    %c0_i32 = arith.constant 0 : i32
    %c0_i32_0 = arith.constant 0 : i32
    return %arg0, %c0_i32 : i32, i32
  }
  func.func @transform_1(%arg0: i32) -> (i32, i32) {
    %c0_i32 = arith.constant 0 : i32
    %c0_i32_0 = arith.constant 0 : i32
    return %arg0, %c0_i32 : i32, i32
  }
  func.func @transform_2(%arg0: i32) -> (i32, i32, i32) {
    %c0_i32 = arith.constant 0 : i32
    %c0_i32_0 = arith.constant 0 : i32
    %c0_i32_1 = arith.constant 0 : i32
    return %arg0, %c0_i32, %c0_i32_0 : i32, i32, i32
  }
  func.func @transform_3(%arg0: i32) -> (i32, i32, i32) {
    %c0_i32 = arith.constant 0 : i32
    %c0_i32_0 = arith.constant 0 : i32
    %c0_i32_1 = arith.constant 0 : i32
    return %arg0, %c0_i32, %c0_i32_0 : i32, i32, i32
  }
}

</mosaic_0001>

<llo_original>
// kernel: tpu_custom_call.1
$region0: #{tpu_custom_call.1}
  #allocation0 [shape = 'u32[]', space=smem, size = 0x4, offset = 0x4, fixed_abs, tag = 'smem constant byte address 0x4 - core index']
  #allocation1 [shape = 'u32[144,128]{1,0:T(1,128)}', space=vmem, size = 0x12000, scoped, tag = 'internal scratch']
  %s0 = inlined_call_operand.hbm [shape: f32[1,15], index: 0, kind: input, shape index: {}]
  %s1 = inlined_call_operand.vmem [shape: s32[1,5], index: 1, kind: input, shape index: {}]
  %s2 = inlined_call_operand.hbm [shape: f32[1,1,1], index: 2, kind: output, shape index: {0}]
  %s3 = inlined_call_operand.hbm [shape: f32[1,1,1], index: 3, kind: output, shape index: {1}]
  %4 = xla_tuple %s2, %s3
  %s5 = sld [smem:[#allocation0]]
  $region30: #{tpu_custom_call.1} parent=0
    _
  %s7 = ssub.s32 1, %s5
  %s8 = scalar_select 0, %s7, %s5
  $region1: #{tpu_custom_call.1} parent=0
    #allocation2 [shape = 'u8[512]{0}', space=vmem, size = 0x400, scoped, tag = 'input window, operand 0, single buffered']
    #allocation3 [shape = 's32[1]{0}', space=sflag, size = 0x4, scoped, tag = 'scoped memory for tpu_custom_call.1']
    #allocation4 [shape = 's32[1]{0}', space=sflag, size = 0x4, scoped, tag = 'scoped memory for tpu_custom_call.1']
    #allocation5 [shape = 'u8[512]{0}', space=vmem, size = 0x400, scoped, tag = 'output window, operand 0, single buffered']
    #allocation6 [shape = 'u8[512]{0}', space=vmem, size = 0x400, scoped, tag = 'output window, operand 1, single buffered']
    #allocation7 [shape = 's32[1]{0}', space=sflag, size = 0x4, scoped, tag = 'scoped memory for tpu_custom_call.1']
    %9 = vsyncpa [#allocation3], 0
    %10 = vsyncpa [#allocation4], 0
    %11 = vsyncpa [#allocation7], 0
    // Predicated region
    $region2: #{tpu_custom_call.1} parent=1 // pred_check
      _
    $region3: #{tpu_custom_call.1} parent=1 // pred_check_branch
      %13 = sbr.rel (0) target = $region5
    $region4: #{tpu_custom_call.1} parent=1 // pred_region
      %s15 = ssub.s32 16, 16
      %16 = vsyncadd [#allocation3], %s15
      %s18 = sshll.u32 [#allocation2], 4
      %s19 = int_to_ptr.vmem [resolvable:$true] %s18
      %21 = dma.hbm_to_vmem [thread:$0]  %s0, 16, %s19, [#allocation3]
    $region5: #{tpu_custom_call.1} parent=1 // pred_fallthru
      _
    // Predicated region
    $region6: #{tpu_custom_call.1} parent=1 // pred_check
      _
    $region7: #{tpu_custom_call.1} parent=1 // pred_check_branch
      %23 = sbr.rel (0) target = $region9
    $region8: #{tpu_custom_call.1} parent=1 // pred_region
      _
    $region9: #{tpu_custom_call.1} parent=1 // pred_fallthru
      _
    // Predicated region
    $region10: #{tpu_custom_call.1} parent=1 // pred_check
      _
    $region11: #{tpu_custom_call.1} parent=1 // pred_check_branch
      %25 = sbr.rel (0) target = $region13
    $region12: #{tpu_custom_call.1} parent=1 // pred_region
      %26 = dma.done [#allocation3], 16
    $region13: #{tpu_custom_call.1} parent=1 // pred_fallthru
      _
    %v27 = vld [vmem:[#allocation2] sm:$0x1]
    %v28 = vld [vmem:[%s1] sm:$0x1]
    %v29 = vlaneseq
    %v30 = vshrl.u32 %v29, 7
    %v31 = vadd.s32 %v30, 8
    %v32 = vlaneseq
    %v33 = vand.u32 %v32, 127
    %v34 = vmul.u32 %v33, 3
    %vm35 = vcmp.ge.s32.totalorder %v30, %v34
    %vm36 = vcmp.ge.s32.totalorder %v31, %v34
    %v37 = vadd.s32 %v34, 3
    %vm38 = vcmp.lt.s32.totalorder %v30, %v37
    %vm39 = vcmp.lt.s32.totalorder %v31, %v37
    %vm40 = vmand %vm35, %vm38
    %vm41 = vmand %vm36, %vm39
    %v42 = vsel %vm40, 1, 0
    %v43 = vsel %vm41, 1, 0
    %v44 = vcvt.s32.f32 %v42
    %v45 = vcvt.s32.f32 %v43
    %v46 = vmul.u32 %v30, 3
    %vm47 = vcmp.ge.s32.totalorder %v33, %v46
    %v48 = vadd.s32 %v46, 3
    %vm49 = vcmp.lt.s32.totalorder %v33, %v48
    %vm50 = vmand %vm47, %vm49
    %v51 = vsel %vm50, 1, 0
    %v52 = vcvt.s32.f32 %v51
    %v53 = vadd.s32 %v28, %v34
    %v54 = vcvt.s32.f32 %v53
    %vm55 = vcmask 39936
    %v57 = vsel %vm55, %v54, 0
    %vm59 = vcmask 1044480
    %v61 = vsel %vm59, %v52, 0
    %63 = vmatprep.subr.mxu0 0.0
    %v64 = vand.u32 %v61, 4294901760
    %65 = vmatpush1.msra.mxu0 %v64
    %66 = vmatprep.subr.mxu0 0.0
    %67 = vmatpush1.msra.mxu0 0.0
    %68 = vmatprep.subr.mxu0 0.0
    %69 = vmatpush1.msra.mxu0 0.0
    %70 = vmatprep.subr.mxu0 0.0
    %71 = vmatpush1.msra.mxu0 0.0
    %72 = vmatprep.subr.mxu0 0.0
    %73 = vmatpush1.msra.mxu0 0.0
    %74 = vmatprep.subr.mxu0 0.0
    %75 = vmatpush1.msra.mxu0 0.0
    %76 = vmatprep.subr.mxu0 0.0
    %77 = vmatpush1.msra.mxu0 0.0
    %78 = vmatprep.subr.mxu0 0.0
    %79 = vmatpush1.msra.mxu0 0.0
    %80 = vmatprep.subr.mxu0 0.0
    %81 = vmatpush1.msra.mxu0 0.0
    %82 = vmatprep.subr.mxu0 0.0
    %83 = vmatpush1.msra.mxu0 0.0
    %84 = vmatprep.subr.mxu0 0.0
    %85 = vmatpush1.msra.mxu0 0.0
    %86 = vmatprep.subr.mxu0 0.0
    %87 = vmatpush1.msra.mxu0 0.0
    %88 = vmatprep.subr.mxu0 0.0
    %89 = vmatpush1.msra.mxu0 0.0
    %90 = vmatprep.subr.mxu0 0.0
    %91 = vmatpush1.msra.mxu0 0.0
    %92 = vmatprep.subr.mxu0 0.0
    %93 = vmatpush1.msra.mxu0 0.0
    %94 = vmatprep.subr.mxu0 0.0
    %95 = vmatpush1.msra.mxu0 0.0
    %96 = vmatprep.subr.mxu0 0.0
    %97 = vmatpush1.msra.mxu0 0.0
    %98 = vmatprep.subr.mxu0 0.0
    %99 = vmatpush1.msra.mxu0 0.0
    %100 = vmatprep.subr.mxu0 0.0
    %101 = vmatpush1.msra.mxu0 0.0
    %102 = vmatprep.subr.mxu0 0.0
    %103 = vmatpush1.msra.mxu0 0.0
    %104 = vmatprep.subr.mxu0 0.0
    %105 = vmatpush1.msra.mxu0 0.0
    %106 = vmatprep.subr.mxu0 0.0
    %107 = vmatpush1.msra.mxu0 0.0
    %108 = vmatprep.subr.mxu0 0.0
    %109 = vmatpush1.msra.mxu0 0.0
    %110 = vmatprep.subr.mxu0 0.0
    %111 = vmatpush1.msra.mxu0 0.0
    %112 = vmatprep.subr.mxu0 0.0
    %113 = vmatpush1.msra.mxu0 0.0
    %114 = vmatprep.subr.mxu0 0.0
    %115 = vmatpush1.msra.mxu0 0.0
    %116 = vmatprep.subr.mxu0 0.0
    %117 = vmatpush1.msra.mxu0 0.0
    %118 = vmatprep.subr.mxu0 0.0
    %119 = vmatpush1.msra.mxu0 0.0
    %120 = vmatprep.subr.mxu0 0.0
    %121 = vmatpush1.msra.mxu0 0.0
    %122 = vmatprep.subr.mxu0 0.0
    %123 = vmatpush1.msra.mxu0 0.0
    %124 = vmatprep.subr.mxu0 0.0
    %125 = vmatpush1.msra.mxu0 0.0
    %126 = vmatprep.subr.mxu0 0.0
    %127 = vmatpush1.msra.mxu0 0.0
    %128 = vmatprep.mubr.f32.mxu0 0.0
    %v129 = vand.u32 %v57, 4294901760
    %v130 = vsub.f32 %v57, %v129
    %v131 = vand.u32 %v130, 4294901760
    %v132 = vsub.f32 %v130, %v131
    %v133 = vand.u32 %v132, 4294901760
    %134 = vmatmul.mubr.f32.gmra.mrb[0].mxu0 %v133
    %v135 = vpop.f32.mrb[0].mxu0
    %v136 = vadd.f32 0.0, %v135
    %v137 = vpop.f32.mrb[0].mxu0
    %138 = vdwg.mxu0
    %139 = vmatprep.subr.mxu0 0.0
    %v140 = vand.u32 %v61, 4294901760
    %v141 = vsub.f32 %v61, %v140
    %v142 = vand.u32 %v141, 4294901760
    %v143 = vsub.f32 %v141, %v142
    %v144 = vand.u32 %v143, 4294901760
    %145 = vmatpush1.msra.mxu0 %v144
    %146 = vmatprep.subr.mxu0 0.0
    %147 = vmatpush1.msra.mxu0 0.0
    %148 = vmatprep.subr.mxu0 0.0
    %149 = vmatpush1.msra.mxu0 0.0
    %150 = vmatprep.subr.mxu0 0.0
    %151 = vmatpush1.msra.mxu0 0.0
    %152 = vmatprep.subr.mxu0 0.0
    %153 = vmatpush1.msra.mxu0 0.0
    %154 = vmatprep.subr.mxu0 0.0
    %155 = vmatpush1.msra.mxu0 0.0
    %156 = vmatprep.subr.mxu0 0.0
    %157 = vmatpush1.msra.mxu0 0.0
    %158 = vmatprep.subr.mxu0 0.0
    %159 = vmatpush1.msra.mxu0 0.0
    %160 = vmatprep.subr.mxu0 0.0
    %161 = vmatpush1.msra.mxu0 0.0
    %162 = vmatprep.subr.mxu0 0.0
    %163 = vmatpush1.msra.mxu0 0.0
    %164 = vmatprep.subr.mxu0 0.0
    %165 = vmatpush1.msra.mxu0 0.0
    %166 = vmatprep.subr.mxu0 0.0
    %167 = vmatpush1.msra.mxu0 0.0
    %168 = vmatprep.subr.mxu0 0.0
    %169 = vmatpush1.msra.mxu0 0.0
    %170 = vmatprep.subr.mxu0 0.0
    %171 = vmatpush1.msra.mxu0 0.0
    %172 = vmatprep.subr.mxu0 0.0
    %173 = vmatpush1.msra.mxu0 0.0
    %174 = vmatprep.subr.mxu0 0.0
    %175 = vmatpush1.msra.mxu0 0.0
    %176 = vmatprep.subr.mxu0 0.0
    %177 = vmatpush1.msra.mxu0 0.0
    %178 = vmatprep.subr.mxu0 0.0
    %179 = vmatpush1.msra.mxu0 0.0
    %180 = vmatprep.subr.mxu0 0.0
    %181 = vmatpush1.msra.mxu0 0.0
    %182 = vmatprep.subr.mxu0 0.0
    %183 = vmatpush1.msra.mxu0 0.0
    %184 = vmatprep.subr.mxu0 0.0
    %185 = vmatpush1.msra.mxu0 0.0
    %186 = vmatprep.subr.mxu0 0.0
    %187 = vmatpush1.msra.mxu0 0.0
    %188 = vmatprep.subr.mxu0 0.0
    %189 = vmatpush1.msra.mxu0 0.0
    %190 = vmatprep.subr.mxu0 0.0
    %191 = vmatpush1.msra.mxu0 0.0
    %192 = vmatprep.subr.mxu0 0.0
    %193 = vmatpush1.msra.mxu0 0.0
    %194 = vmatprep.subr.mxu0 0.0
    %195 = vmatpush1.msra.mxu0 0.0
    %196 = vmatprep.subr.mxu0 0.0
    %197 = vmatpush1.msra.mxu0 0.0
    %198 = vmatprep.subr.mxu0 0.0
    %199 = vmatpush1.msra.mxu0 0.0
    %200 = vmatprep.subr.mxu0 0.0
    %201 = vmatpush1.msra.mxu0 0.0
    %202 = vmatprep.subr.mxu0 0.0
    %203 = vmatpush1.msra.mxu0 0.0
    %204 = vmatprep.subr.mxu0 0.0
    %205 = vmatpush1.msra.mxu0 0.0
    %206 = vmatprep.subr.mxu0 0.0
    %207 = vmatpush1.msra.mxu0 0.0
    %208 = vmatprep.mubr.f32.mxu0 0.0
    %v209 = vand.u32 %v57, 4294901760
    %210 = vmatmul.mubr.f32.gmra.mrb[0].mxu0 %v209
    %v211 = vpop.f32.mrb[0].mxu0
    %v212 = vadd.f32 %v136, %v211
    %v213 = vpop.f32.mrb[0].mxu0
    %214 = vdwg.mxu0
    %215 = vmatprep.subr.mxu0 0.0
    %v216 = vand.u32 %v61, 4294901760
    %v217 = vsub.f32 %v61, %v216
    %218 = vmatpush1.msra.mxu0 %v217
    %219 = vmatprep.subr.mxu0 0.0
    %220 = vmatpush1.msra.mxu0 0.0
    %221 = vmatprep.subr.mxu0 0.0
    %222 = vmatpush1.msra.mxu0 0.0
    %223 = vmatprep.subr.mxu0 0.0
    %224 = vmatpush1.msra.mxu0 0.0
    %225 = vmatprep.subr.mxu0 0.0
    %226 = vmatpush1.msra.mxu0 0.0
    %227 = vmatprep.subr.mxu0 0.0
    %228 = vmatpush1.msra.mxu0 0.0
    %229 = vmatprep.subr.mxu0 0.0
    %230 = vmatpush1.msra.mxu0 0.0
    %231 = vmatprep.subr.mxu0 0.0
    %232 = vmatpush1.msra.mxu0 0.0
    %233 = vmatprep.subr.mxu0 0.0
    %234 = vmatpush1.msra.mxu0 0.0
    %235 = vmatprep.subr.mxu0 0.0
    %236 = vmatpush1.msra.mxu0 0.0
    %237 = vmatprep.subr.mxu0 0.0
    %238 = vmatpush1.msra.mxu0 0.0
    %239 = vmatprep.subr.mxu0 0.0
    %240 = vmatpush1.msra.mxu0 0.0
    %241 = vmatprep.subr.mxu0 0.0
    %242 = vmatpush1.msra.mxu0 0.0
    %243 = vmatprep.subr.mxu0 0.0
    %244 = vmatpush1.msra.mxu0 0.0
    %245 = vmatprep.subr.mxu0 0.0
    %246 = vmatpush1.msra.mxu0 0.0
    %247 = vmatprep.subr.mxu0 0.0
    %248 = vmatpush1.msra.mxu0 0.0
    %249 = vmatprep.subr.mxu0 0.0
    %250 = vmatpush1.msra.mxu0 0.0
    %251 = vmatprep.subr.mxu0 0.0
    %252 = vmatpush1.msra.mxu0 0.0
    %253 = vmatprep.subr.mxu0 0.0
    %254 = vmatpush1.msra.mxu0 0.0
    %255 = vmatprep.subr.mxu0 0.0
    %256 = vmatpush1.msra.mxu0 0.0
    %257 = vmatprep.subr.mxu0 0.0
    %258 = vmatpush1.msra.mxu0 0.0
    %259 = vmatprep.subr.mxu0 0.0
    %260 = vmatpush1.msra.mxu0 0.0
    %261 = vmatprep.subr.mxu0 0.0
    %262 = vmatpush1.msra.mxu0 0.0
    %263 = vmatprep.subr.mxu0 0.0
    %264 = vmatpush1.msra.mxu0 0.0
    %265 = vmatprep.subr.mxu0 0.0
    %266 = vmatpush1.msra.mxu0 0.0
    %267 = vmatprep.subr.mxu0 0.0
    %268 = vmatpush1.msra.mxu0 0.0
    %269 = vmatprep.subr.mxu0 0.0
    %270 = vmatpush1.msra.mxu0 0.0
    %271 = vmatprep.subr.mxu0 0.0
    %272 = vmatpush1.msra.mxu0 0.0
    %273 = vmatprep.subr.mxu0 0.0
    %274 = vmatpush1.msra.mxu0 0.0
    %275 = vmatprep.subr.mxu0 0.0
    %276 = vmatpush1.msra.mxu0 0.0
    %277 = vmatprep.subr.mxu0 0.0
    %278 = vmatpush1.msra.mxu0 0.0
    %279 = vmatprep.subr.mxu0 0.0
    %280 = vmatpush1.msra.mxu0 0.0
    %281 = vmatprep.mubr.f32.mxu0 0.0
    %v282 = vand.u32 %v57, 4294901760
    %v283 = vsub.f32 %v57, %v282
    %284 = vmatmul.mubr.f32.gmra.mrb[0].mxu0 %v283
    %v285 = vpop.f32.mrb[0].mxu0
    %v286 = vadd.f32 %v212, %v285
    %v287 = vpop.f32.mrb[0].mxu0
    %288 = vdwg.mxu0
    %289 = vmatprep.subr.mxu0 0.0
    %v290 = vand.u32 %v61, 4294901760
    %291 = vmatpush1.msra.mxu0 %v290
    %292 = vmatprep.subr.mxu0 0.0
    %293 = vmatpush1.msra.mxu0 0.0
    %294 = vmatprep.subr.mxu0 0.0
    %295 = vmatpush1.msra.mxu0 0.0
    %296 = vmatprep.subr.mxu0 0.0
    %297 = vmatpush1.msra.mxu0 0.0
    %298 = vmatprep.subr.mxu0 0.0
    %299 = vmatpush1.msra.mxu0 0.0
    %300 = vmatprep.subr.mxu0 0.0
    %301 = vmatpush1.msra.mxu0 0.0
    %302 = vmatprep.subr.mxu0 0.0
    %303 = vmatpush1.msra.mxu0 0.0
    %304 = vmatprep.subr.mxu0 0.0
    %305 = vmatpush1.msra.mxu0 0.0
    %306 = vmatprep.subr.mxu0 0.0
    %307 = vmatpush1.msra.mxu0 0.0
    %308 = vmatprep.subr.mxu0 0.0
    %309 = vmatpush1.msra.mxu0 0.0
    %310 = vmatprep.subr.mxu0 0.0
    %311 = vmatpush1.msra.mxu0 0.0
    %312 = vmatprep.subr.mxu0 0.0
    %313 = vmatpush1.msra.mxu0 0.0
    %314 = vmatprep.subr.mxu0 0.0
    %315 = vmatpush1.msra.mxu0 0.0
    %316 = vmatprep.subr.mxu0 0.0
    %317 = vmatpush1.msra.mxu0 0.0
    %318 = vmatprep.subr.mxu0 0.0
    %319 = vmatpush1.msra.mxu0 0.0
    %320 = vmatprep.subr.mxu0 0.0
    %321 = vmatpush1.msra.mxu0 0.0
    %322 = vmatprep.subr.mxu0 0.0
    %323 = vmatpush1.msra.mxu0 0.0
    %324 = vmatprep.subr.mxu0 0.0
    %325 = vmatpush1.msra.mxu0 0.0
    %326 = vmatprep.subr.mxu0 0.0
    %327 = vmatpush1.msra.mxu0 0.0
    %328 = vmatprep.subr.mxu0 0.0
    %329 = vmatpush1.msra.mxu0 0.0
    %330 = vmatprep.subr.mxu0 0.0
    %331 = vmatpush1.msra.mxu0 0.0
    %332 = vmatprep.subr.mxu0 0.0
    %333 = vmatpush1.msra.mxu0 0.0
    %334 = vmatprep.subr.mxu0 0.0
    %335 = vmatpush1.msra.mxu0 0.0
    %336 = vmatprep.subr.mxu0 0.0
    %337 = vmatpush1.msra.mxu0 0.0
    %338 = vmatprep.subr.mxu0 0.0
    %339 = vmatpush1.msra.mxu0 0.0
    %340 = vmatprep.subr.mxu0 0.0
    %341 = vmatpush1.msra.mxu0 0.0
    %342 = vmatprep.subr.mxu0 0.0
    %343 = vmatpush1.msra.mxu0 0.0
    %344 = vmatprep.subr.mxu0 0.0
    %345 = vmatpush1.msra.mxu0 0.0
    %346 = vmatprep.subr.mxu0 0.0
    %347 = vmatpush1.msra.mxu0 0.0
    %348 = vmatprep.subr.mxu0 0.0
    %349 = vmatpush1.msra.mxu0 0.0
    %350 = vmatprep.subr.mxu0 0.0
    %351 = vmatpush1.msra.mxu0 0.0
    %352 = vmatprep.subr.mxu0 0.0
    %353 = vmatpush1.msra.mxu0 0.0
    %354 = vmatprep.mubr.f32.mxu0 0.0
    %v355 = vand.u32 %v57, 4294901760
    %v356 = vsub.f32 %v57, %v355
    %v357 = vand.u32 %v356, 4294901760
    %358 = vmatmul.mubr.f32.gmra.mrb[0].mxu0 %v357
    %v359 = vpop.f32.mrb[0].mxu0
    %v360 = vadd.f32 %v286, %v359
    %v361 = vpop.f32.mrb[0].mxu0
    %362 = vdwg.mxu0
    %363 = vmatprep.subr.mxu0 0.0
    %v364 = vand.u32 %v61, 4294901760
    %v365 = vsub.f32 %v61, %v364
    %v366 = vand.u32 %v365, 4294901760
    %367 = vmatpush1.msra.mxu0 %v366
    %368 = vmatprep.subr.mxu0 0.0
    %369 = vmatpush1.msra.mxu0 0.0
    %370 = vmatprep.subr.mxu0 0.0
    %371 = vmatpush1.msra.mxu0 0.0
    %372 = vmatprep.subr.mxu0 0.0
    %373 = vmatpush1.msra.mxu0 0.0
    %374 = vmatprep.subr.mxu0 0.0
    %375 = vmatpush1.msra.mxu0 0.0
    %376 = vmatprep.subr.mxu0 0.0
    %377 = vmatpush1.msra.mxu0 0.0
    %378 = vmatprep.subr.mxu0 0.0
    %379 = vmatpush1.msra.mxu0 0.0
    %380 = vmatprep.subr.mxu0 0.0
    %381 = vmatpush1.msra.mxu0 0.0
    %382 = vmatprep.subr.mxu0 0.0
    %383 = vmatpush1.msra.mxu0 0.0
    %384 = vmatprep.subr.mxu0 0.0
    %385 = vmatpush1.msra.mxu0 0.0
    %386 = vmatprep.subr.mxu0 0.0
    %387 = vmatpush1.msra.mxu0 0.0
    %388 = vmatprep.subr.mxu0 0.0
    %389 = vmatpush1.msra.mxu0 0.0
    %390 = vmatprep.subr.mxu0 0.0
    %391 = vmatpush1.msra.mxu0 0.0
    %392 = vmatprep.subr.mxu0 0.0
    %393 = vmatpush1.msra.mxu0 0.0
    %394 = vmatprep.subr.mxu0 0.0
    %395 = vmatpush1.msra.mxu0 0.0
    %396 = vmatprep.subr.mxu0 0.0
    %397 = vmatpush1.msra.mxu0 0.0
    %398 = vmatprep.subr.mxu0 0.0
    %399 = vmatpush1.msra.mxu0 0.0
    %400 = vmatprep.subr.mxu0 0.0
    %401 = vmatpush1.msra.mxu0 0.0
    %402 = vmatprep.subr.mxu0 0.0
    %403 = vmatpush1.msra.mxu0 0.0
    %404 = vmatprep.subr.mxu0 0.0
    %405 = vmatpush1.msra.mxu0 0.0
    %406 = vmatprep.subr.mxu0 0.0
    %407 = vmatpush1.msra.mxu0 0.0
    %408 = vmatprep.subr.mxu0 0.0
    %409 = vmatpush1.msra.mxu0 0.0
    %410 = vmatprep.subr.mxu0 0.0
    %411 = vmatpush1.msra.mxu0 0.0
    %412 = vmatprep.subr.mxu0 0.0
    %413 = vmatpush1.msra.mxu0 0.0
    %414 = vmatprep.subr.mxu0 0.0
    %415 = vmatpush1.msra.mxu0 0.0
    %416 = vmatprep.subr.mxu0 0.0
    %417 = vmatpush1.msra.mxu0 0.0
    %418 = vmatprep.subr.mxu0 0.0
    %419 = vmatpush1.msra.mxu0 0.0
    %420 = vmatprep.subr.mxu0 0.0
    %421 = vmatpush1.msra.mxu0 0.0
    %422 = vmatprep.subr.mxu0 0.0
    %423 = vmatpush1.msra.mxu0 0.0
    %424 = vmatprep.subr.mxu0 0.0
    %425 = vmatpush1.msra.mxu0 0.0
    %426 = vmatprep.subr.mxu0 0.0
    %427 = vmatpush1.msra.mxu0 0.0
    %428 = vmatprep.subr.mxu0 0.0
    %429 = vmatpush1.msra.mxu0 0.0
    %430 = vmatprep.mubr.f32.mxu0 0.0
    %v431 = vand.u32 %v57, 4294901760
    %432 = vmatmul.mubr.f32.gmra.mrb[0].mxu0 %v431
    %v433 = vpop.f32.mrb[0].mxu0
    %v434 = vadd.f32 %v360, %v433
    %v435 = vpop.f32.mrb[0].mxu0
    %436 = vdwg.mxu0
    %437 = vmatprep.subr.mxu0 0.0
    %v438 = vand.u32 %v61, 4294901760
    %439 = vmatpush1.msra.mxu0 %v438
    %440 = vmatprep.subr.mxu0 0.0
    %441 = vmatpush1.msra.mxu0 0.0
    %442 = vmatprep.subr.mxu0 0.0
    %443 = vmatpush1.msra.mxu0 0.0
    %444 = vmatprep.subr.mxu0 0.0
    %445 = vmatpush1.msra.mxu0 0.0
    %446 = vmatprep.subr.mxu0 0.0
    %447 = vmatpush1.msra.mxu0 0.0
    %448 = vmatprep.subr.mxu0 0.0
    %449 = vmatpush1.msra.mxu0 0.0
    %450 = vmatprep.subr.mxu0 0.0
    %451 = vmatpush1.msra.mxu0 0.0
    %452 = vmatprep.subr.mxu0 0.0
    %453 = vmatpush1.msra.mxu0 0.0
    %454 = vmatprep.subr.mxu0 0.0
    %455 = vmatpush1.msra.mxu0 0.0
    %456 = vmatprep.subr.mxu0 0.0
    %457 = vmatpush1.msra.mxu0 0.0
    %458 = vmatprep.subr.mxu0 0.0
    %459 = vmatpush1.msra.mxu0 0.0
    %460 = vmatprep.subr.mxu0 0.0
    %461 = vmatpush1.msra.mxu0 0.0
    %462 = vmatprep.subr.mxu0 0.0
    %463 = vmatpush1.msra.mxu0 0.0
    %464 = vmatprep.subr.mxu0 0.0
    %465 = vmatpush1.msra.mxu0 0.0
    %466 = vmatprep.subr.mxu0 0.0
    %467 = vmatpush1.msra.mxu0 0.0
    %468 = vmatprep.subr.mxu0 0.0
    %469 = vmatpush1.msra.mxu0 0.0
    %470 = vmatprep.subr.mxu0 0.0
    %471 = vmatpush1.msra.mxu0 0.0
    %472 = vmatprep.subr.mxu0 0.0
    %473 = vmatpush1.msra.mxu0 0.0
    %474 = vmatprep.subr.mxu0 0.0
    %475 = vmatpush1.msra.mxu0 0.0
    %476 = vmatprep.subr.mxu0 0.0
    %477 = vmatpush1.msra.mxu0 0.0
    %478 = vmatprep.subr.mxu0 0.0
    %479 = vmatpush1.msra.mxu0 0.0
    %480 = vmatprep.subr.mxu0 0.0
    %481 = vmatpush1.msra.mxu0 0.0
    %482 = vmatprep.subr.mxu0 0.0
    %483 = vmatpush1.msra.mxu0 0.0
    %484 = vmatprep.subr.mxu0 0.0
    %485 = vmatpush1.msra.mxu0 0.0
    %486 = vmatprep.subr.mxu0 0.0
    %487 = vmatpush1.msra.mxu0 0.0
    %488 = vmatprep.subr.mxu0 0.0
    %489 = vmatpush1.msra.mxu0 0.0
    %490 = vmatprep.subr.mxu0 0.0
    %491 = vmatpush1.msra.mxu0 0.0
    %492 = vmatprep.subr.mxu0 0.0
    %493 = vmatpush1.msra.mxu0 0.0
    %494 = vmatprep.subr.mxu0 0.0
    %495 = vmatpush1.msra.mxu0 0.0
    %496 = vmatprep.subr.mxu0 0.0
    %497 = vmatpush1.msra.mxu0 0.0
    %498 = vmatprep.subr.mxu0 0.0
    %499 = vmatpush1.msra.mxu0 0.0
    %500 = vmatprep.subr.mxu0 0.0
    %501 = vmatpush1.msra.mxu0 0.0
    %502 = vmatprep.mubr.f32.mxu0 0.0
    %v503 = vand.u32 %v57, 4294901760
    %504 = vmatmul.mubr.f32.gmra.mrb[0].mxu0 %v503
    %v505 = vpop.f32.mrb[0].mxu0
    %v506 = vadd.f32 %v434, %v505
    %v507 = vpop.f32.mrb[0].mxu0
    %508 = vdwg.mxu0
    %v509 = vcvt.s32.f32 %v33
    %vm510 = vcmp.eq.f32.partialorder %v509, %v506
    %v511 = vsel %vm510, %v27, 0.0
    %vm512 = vcmask 121856
    %v514 = vsel %vm512, %v511, 0
    %vm516 = vcmask 1046528
    %v518 = vsel %vm516, %v45, 0
    %520 = vmatprep.subr.mxu0 0.0
    %v521 = vand.u32 %v44, 4294901760
    %522 = vmatpush1.msra.mxu0 %v521
    %523 = vmatprep.subr.mxu0 0.0
    %v524 = vand.u32 %v518, 4294901760
    %525 = vmatpush1.msra.mxu0 %v524
    %526 = vmatprep.subr.mxu0 0.0
    %527 = vmatpush1.msra.mxu0 0.0
    %528 = vmatprep.subr.mxu0 0.0
    %529 = vmatpush1.msra.mxu0 0.0
    %530 = vmatprep.subr.mxu0 0.0
    %531 = vmatpush1.msra.mxu0 0.0
    %532 = vmatprep.subr.mxu0 0.0
    %533 = vmatpush1.msra.mxu0 0.0
    %534 = vmatprep.subr.mxu0 0.0
    %535 = vmatpush1.msra.mxu0 0.0
    %536 = vmatprep.subr.mxu0 0.0
    %537 = vmatpush1.msra.mxu0 0.0
    %538 = vmatprep.subr.mxu0 0.0
    %539 = vmatpush1.msra.mxu0 0.0
    %540 = vmatprep.subr.mxu0 0.0
    %541 = vmatpush1.msra.mxu0 0.0
    %542 = vmatprep.subr.mxu0 0.0
    %543 = vmatpush1.msra.mxu0 0.0
    %544 = vmatprep.subr.mxu0 0.0
    %545 = vmatpush1.msra.mxu0 0.0
    %546 = vmatprep.subr.mxu0 0.0
    %547 = vmatpush1.msra.mxu0 0.0
    %548 = vmatprep.subr.mxu0 0.0
    %549 = vmatpush1.msra.mxu0 0.0
    %550 = vmatprep.subr.mxu0 0.0
    %551 = vmatpush1.msra.mxu0 0.0
    %552 = vmatprep.subr.mxu0 0.0
    %553 = vmatpush1.msra.mxu0 0.0
    %554 = vmatprep.subr.mxu0 0.0
    %555 = vmatpush1.msra.mxu0 0.0
    %556 = vmatprep.subr.mxu0 0.0
    %557 = vmatpush1.msra.mxu0 0.0
    %558 = vmatprep.subr.mxu0 0.0
    %559 = vmatpush1.msra.mxu0 0.0
    %560 = vmatprep.subr.mxu0 0.0
    %561 = vmatpush1.msra.mxu0 0.0
    %562 = vmatprep.subr.mxu0 0.0
    %563 = vmatpush1.msra.mxu0 0.0
    %564 = vmatprep.subr.mxu0 0.0
    %565 = vmatpush1.msra.mxu0 0.0
    %566 = vmatprep.subr.mxu0 0.0
    %567 = vmatpush1.msra.mxu0 0.0
    %568 = vmatprep.subr.mxu0 0.0
    %569 = vmatpush1.msra.mxu0 0.0
    %570 = vmatprep.subr.mxu0 0.0
    %571 = vmatpush1.msra.mxu0 0.0
    %572 = vmatprep.subr.mxu0 0.0
    %573 = vmatpush1.msra.mxu0 0.0
    %574 = vmatprep.subr.mxu0 0.0
    %575 = vmatpush1.msra.mxu0 0.0
    %576 = vmatprep.subr.mxu0 0.0
    %577 = vmatpush1.msra.mxu0 0.0
    %578 = vmatprep.subr.mxu0 0.0
    %579 = vmatpush1.msra.mxu0 0.0
    %580 = vmatprep.subr.mxu0 0.0
    %581 = vmatpush1.msra.mxu0 0.0
    %582 = vmatprep.subr.mxu0 0.0
    %583 = vmatpush1.msra.mxu0 0.0
    %584 = vmatprep.subr.mxu0 0.0
    %585 = vmatpush1.msra.mxu0 0.0
    %586 = vmatprep.mubr.f32.mxu0 0.0
    %v587 = vand.u32 %v514, 4294901760
    %v588 = vsub.f32 %v514, %v587
    %v589 = vand.u32 %v588, 4294901760
    %v590 = vsub.f32 %v588, %v589
    %v591 = vand.u32 %v590, 4294901760
    %592 = vmatmul.mubr.f32.gmra.mrb[0].mxu0 %v591
    %v593 = vpop.f32.mrb[0].mxu0
    %v594 = vadd.f32 0.0, %v593
    %v595 = vpop.f32.mrb[0].mxu0
    %596 = vdwg.mxu0
    %597 = vmatprep.subr.mxu0 0.0
    %v598 = vand.u32 %v44, 4294901760
    %v599 = vsub.f32 %v44, %v598
    %v600 = vand.u32 %v599, 4294901760
    %v601 = vsub.f32 %v599, %v600
    %v602 = vand.u32 %v601, 4294901760
    %603 = vmatpush1.msra.mxu0 %v602
    %604 = vmatprep.subr.mxu0 0.0
    %v605 = vand.u32 %v518, 4294901760
    %v606 = vsub.f32 %v518, %v605
    %v607 = vand.u32 %v606, 4294901760
    %v608 = vsub.f32 %v606, %v607
    %v609 = vand.u32 %v608, 4294901760
    %610 = vmatpush1.msra.mxu0 %v609
    %611 = vmatprep.subr.mxu0 0.0
    %612 = vmatpush1.msra.mxu0 0.0
    %613 = vmatprep.subr.mxu0 0.0
    %614 = vmatpush1.msra.mxu0 0.0
    %615 = vmatprep.subr.mxu0 0.0
    %616 = vmatpush1.msra.mxu0 0.0
    %617 = vmatprep.subr.mxu0 0.0
    %618 = vmatpush1.msra.mxu0 0.0
    %619 = vmatprep.subr.mxu0 0.0
    %620 = vmatpush1.msra.mxu0 0.0
    %621 = vmatprep.subr.mxu0 0.0
    %622 = vmatpush1.msra.mxu0 0.0
    %623 = vmatprep.subr.mxu0 0.0
    %624 = vmatpush1.msra.mxu0 0.0
    %625 = vmatprep.subr.mxu0 0.0
    %626 = vmatpush1.msra.mxu0 0.0
    %627 = vmatprep.subr.mxu0 0.0
    %628 = vmatpush1.msra.mxu0 0.0
    %629 = vmatprep.subr.mxu0 0.0
    %630 = vmatpush1.msra.mxu0 0.0
    %631 = vmatprep.subr.mxu0 0.0
    %632 = vmatpush1.msra.mxu0 0.0
    %633 = vmatprep.subr.mxu0 0.0
    %634 = vmatpush1.msra.mxu0 0.0
    %635 = vmatprep.subr.mxu0 0.0
    %636 = vmatpush1.msra.mxu0 0.0
    %637 = vmatprep.subr.mxu0 0.0
    %638 = vmatpush1.msra.mxu0 0.0
    %639 = vmatprep.subr.mxu0 0.0
    %640 = vmatpush1.msra.mxu0 0.0
    %641 = vmatprep.subr.mxu0 0.0
    %642 = vmatpush1.msra.mxu0 0.0
    %643 = vmatprep.subr.mxu0 0.0
    %644 = vmatpush1.msra.mxu0 0.0
    %645 = vmatprep.subr.mxu0 0.0
    %646 = vmatpush1.msra.mxu0 0.0
    %647 = vmatprep.subr.mxu0 0.0
    %648 = vmatpush1.msra.mxu0 0.0
    %649 = vmatprep.subr.mxu0 0.0
    %650 = vmatpush1.msra.mxu0 0.0
    %651 = vmatprep.subr.mxu0 0.0
    %652 = vmatpush1.msra.mxu0 0.0
    %653 = vmatprep.subr.mxu0 0.0
    %654 = vmatpush1.msra.mxu0 0.0
    %655 = vmatprep.subr.mxu0 0.0
    %656 = vmatpush1.msra.mxu0 0.0
    %657 = vmatprep.subr.mxu0 0.0
    %658 = vmatpush1.msra.mxu0 0.0
    %659 = vmatprep.subr.mxu0 0.0
    %660 = vmatpush1.msra.mxu0 0.0
    %661 = vmatprep.subr.mxu0 0.0
    %662 = vmatpush1.msra.mxu0 0.0
    %663 = vmatprep.subr.mxu0 0.0
    %664 = vmatpush1.msra.mxu0 0.0
    %665 = vmatprep.subr.mxu0 0.0
    %666 = vmatpush1.msra.mxu0 0.0
    %667 = vmatprep.subr.mxu0 0.0
    %668 = vmatpush1.msra.mxu0 0.0
    %669 = vmatprep.subr.mxu0 0.0
    %670 = vmatpush1.msra.mxu0 0.0
    %671 = vmatprep.mubr.f32.mxu0 0.0
    %v672 = vand.u32 %v514, 4294901760
    %673 = vmatmul.mubr.f32.gmra.mrb[0].mxu0 %v672
    %v674 = vpop.f32.mrb[0].mxu0
    %v675 = vadd.f32 %v594, %v674
    %v676 = vpop.f32.mrb[0].mxu0
    %677 = vdwg.mxu0
    %678 = vmatprep.subr.mxu0 0.0
    %v679 = vand.u32 %v44, 4294901760
    %v680 = vsub.f32 %v44, %v679
    %681 = vmatpush1.msra.mxu0 %v680
    %682 = vmatprep.subr.mxu0 0.0
    %v683 = vand.u32 %v518, 4294901760
    %v684 = vsub.f32 %v518, %v683
    %685 = vmatpush1.msra.mxu0 %v684
    %686 = vmatprep.subr.mxu0 0.0
    %687 = vmatpush1.msra.mxu0 0.0
    %688 = vmatprep.subr.mxu0 0.0
    %689 = vmatpush1.msra.mxu0 0.0
    %690 = vmatprep.subr.mxu0 0.0
    %691 = vmatpush1.msra.mxu0 0.0
    %692 = vmatprep.subr.mxu0 0.0
    %693 = vmatpush1.msra.mxu0 0.0
    %694 = vmatprep.subr.mxu0 0.0
    %695 = vmatpush1.msra.mxu0 0.0
    %696 = vmatprep.subr.mxu0 0.0
    %697 = vmatpush1.msra.mxu0 0.0
    %698 = vmatprep.subr.mxu0 0.0
    %699 = vmatpush1.msra.mxu0 0.0
    %700 = vmatprep.subr.mxu0 0.0
    %701 = vmatpush1.msra.mxu0 0.0
    %702 = vmatprep.subr.mxu0 0.0
    %703 = vmatpush1.msra.mxu0 0.0
    %704 = vmatprep.subr.mxu0 0.0
    %705 = vmatpush1.msra.mxu0 0.0
    %706 = vmatprep.subr.mxu0 0.0
    %707 = vmatpush1.msra.mxu0 0.0
    %708 = vmatprep.subr.mxu0 0.0
    %709 = vmatpush1.msra.mxu0 0.0
    %710 = vmatprep.subr.mxu0 0.0
    %711 = vmatpush1.msra.mxu0 0.0
    %712 = vmatprep.subr.mxu0 0.0
    %713 = vmatpush1.msra.mxu0 0.0
    %714 = vmatprep.subr.mxu0 0.0
    %715 = vmatpush1.msra.mxu0 0.0
    %716 = vmatprep.subr.mxu0 0.0
    %717 = vmatpush1.msra.mxu0 0.0
    %718 = vmatprep.subr.mxu0 0.0
    %719 = vmatpush1.msra.mxu0 0.0
    %720 = vmatprep.subr.mxu0 0.0
    %721 = vmatpush1.msra.mxu0 0.0
    %722 = vmatprep.subr.mxu0 0.0
    %723 = vmatpush1.msra.mxu0 0.0
    %724 = vmatprep.subr.mxu0 0.0
    %725 = vmatpush1.msra.mxu0 0.0
    %726 = vmatprep.subr.mxu0 0.0
    %727 = vmatpush1.msra.mxu0 0.0
    %728 = vmatprep.subr.mxu0 0.0
    %729 = vmatpush1.msra.mxu0 0.0
    %730 = vmatprep.subr.mxu0 0.0
    %731 = vmatpush1.msra.mxu0 0.0
    %732 = vmatprep.subr.mxu0 0.0
    %733 = vmatpush1.msra.mxu0 0.0
    %734 = vmatprep.subr.mxu0 0.0
    %735 = vmatpush1.msra.mxu0 0.0
    %736 = vmatprep.subr.mxu0 0.0
    %737 = vmatpush1.msra.mxu0 0.0
    %738 = vmatprep.subr.mxu0 0.0
    %739 = vmatpush1.msra.mxu0 0.0
    %740 = vmatprep.subr.mxu0 0.0
    %741 = vmatpush1.msra.mxu0 0.0
    %742 = vmatprep.subr.mxu0 0.0
    %743 = vmatpush1.msra.mxu0 0.0
    %744 = vmatprep.subr.mxu0 0.0
    %745 = vmatpush1.msra.mxu0 0.0
    %746 = vmatprep.mubr.f32.mxu0 0.0
    %v747 = vand.u32 %v514, 4294901760
    %v748 = vsub.f32 %v514, %v747
    %749 = vmatmul.mubr.f32.gmra.mrb[0].mxu0 %v748
    %v750 = vpop.f32.mrb[0].mxu0
    %v751 = vadd.f32 %v675, %v750
    %v752 = vpop.f32.mrb[0].mxu0
    %753 = vdwg.mxu0
    %754 = vmatprep.subr.mxu0 0.0
    %v755 = vand.u32 %v44, 4294901760
    %756 = vmatpush1.msra.mxu0 %v755
    %757 = vmatprep.subr.mxu0 0.0
    %v758 = vand.u32 %v518, 4294901760
    %759 = vmatpush1.msra.mxu0 %v758
    %760 = vmatprep.subr.mxu0 0.0
    %761 = vmatpush1.msra.mxu0 0.0
    %762 = vmatprep.subr.mxu0 0.0
    %763 = vmatpush1.msra.mxu0 0.0
    %764 = vmatprep.subr.mxu0 0.0
    %765 = vmatpush1.msra.mxu0 0.0
    %766 = vmatprep.subr.mxu0 0.0
    %767 = vmatpush1.msra.mxu0 0.0
    %768 = vmatprep.subr.mxu0 0.0
    %769 = vmatpush1.msra.mxu0 0.0
    %770 = vmatprep.subr.mxu0 0.0
    %771 = vmatpush1.msra.mxu0 0.0
    %772 = vmatprep.subr.mxu0 0.0
    %773 = vmatpush1.msra.mxu0 0.0
    %774 = vmatprep.subr.mxu0 0.0
    %775 = vmatpush1.msra.mxu0 0.0
    %776 = vmatprep.subr.mxu0 0.0
    %777 = vmatpush1.msra.mxu0 0.0
    %778 = vmatprep.subr.mxu0 0.0
    %779 = vmatpush1.msra.mxu0 0.0
    %780 = vmatprep.subr.mxu0 0.0
    %781 = vmatpush1.msra.mxu0 0.0
    %782 = vmatprep.subr.mxu0 0.0
    %783 = vmatpush1.msra.mxu0 0.0
    %784 = vmatprep.subr.mxu0 0.0
    %785 = vmatpush1.msra.mxu0 0.0
    %786 = vmatprep.subr.mxu0 0.0
    %787 = vmatpush1.msra.mxu0 0.0
    %788 = vmatprep.subr.mxu0 0.0
    %789 = vmatpush1.msra.mxu0 0.0
    %790 = vmatprep.subr.mxu0 0.0
    %791 = vmatpush1.msra.mxu0 0.0
    %792 = vmatprep.subr.mxu0 0.0
    %793 = vmatpush1.msra.mxu0 0.0
    %794 = vmatprep.subr.mxu0 0.0
    %795 = vmatpush1.msra.mxu0 0.0
    %796 = vmatprep.subr.mxu0 0.0
    %797 = vmatpush1.msra.mxu0 0.0
    %798 = vmatprep.subr.mxu0 0.0
    %799 = vmatpush1.msra.mxu0 0.0
    %800 = vmatprep.subr.mxu0 0.0
    %801 = vmatpush1.msra.mxu0 0.0
    %802 = vmatprep.subr.mxu0 0.0
    %803 = vmatpush1.msra.mxu0 0.0
    %804 = vmatprep.subr.mxu0 0.0
    %805 = vmatpush1.msra.mxu0 0.0
    %806 = vmatprep.subr.mxu0 0.0
    %807 = vmatpush1.msra.mxu0 0.0
    %808 = vmatprep.subr.mxu0 0.0
    %809 = vmatpush1.msra.mxu0 0.0
    %810 = vmatprep.subr.mxu0 0.0
    %811 = vmatpush1.msra.mxu0 0.0
    %812 = vmatprep.subr.mxu0 0.0
    %813 = vmatpush1.msra.mxu0 0.0
    %814 = vmatprep.subr.mxu0 0.0
    %815 = vmatpush1.msra.mxu0 0.0
    %816 = vmatprep.subr.mxu0 0.0
    %817 = vmatpush1.msra.mxu0 0.0
    %818 = vmatprep.subr.mxu0 0.0
    %819 = vmatpush1.msra.mxu0 0.0
    %820 = vmatprep.mubr.f32.mxu0 0.0
    %v821 = vand.u32 %v514, 4294901760
    %v822 = vsub.f32 %v514, %v821
    %v823 = vand.u32 %v822, 4294901760
    %824 = vmatmul.mubr.f32.gmra.mrb[0].mxu0 %v823
    %v825 = vpop.f32.mrb[0].mxu0
    %v826 = vadd.f32 %v751, %v825
    %v827 = vpop.f32.mrb[0].mxu0
    %828 = vdwg.mxu0
    %829 = vmatprep.subr.mxu0 0.0
    %v830 = vand.u32 %v44, 4294901760
    %v831 = vsub.f32 %v44, %v830
    %v832 = vand.u32 %v831, 4294901760
    %833 = vmatpush1.msra.mxu0 %v832
    %834 = vmatprep.subr.mxu0 0.0
    %v835 = vand.u32 %v518, 4294901760
    %v836 = vsub.f32 %v518, %v835
    %v837 = vand.u32 %v836, 4294901760
    %838 = vmatpush1.msra.mxu0 %v837
    %839 = vmatprep.subr.mxu0 0.0
    %840 = vmatpush1.msra.mxu0 0.0
    %841 = vmatprep.subr.mxu0 0.0
    %842 = vmatpush1.msra.mxu0 0.0
    %843 = vmatprep.subr.mxu0 0.0
    %844 = vmatpush1.msra.mxu0 0.0
    %845 = vmatprep.subr.mxu0 0.0
    %846 = vmatpush1.msra.mxu0 0.0
    %847 = vmatprep.subr.mxu0 0.0
    %848 = vmatpush1.msra.mxu0 0.0
    %849 = vmatprep.subr.mxu0 0.0
    %850 = vmatpush1.msra.mxu0 0.0
    %851 = vmatprep.subr.mxu0 0.0
    %852 = vmatpush1.msra.mxu0 0.0
    %853 = vmatprep.subr.mxu0 0.0
    %854 = vmatpush1.msra.mxu0 0.0
    %855 = vmatprep.subr.mxu0 0.0
    %856 = vmatpush1.msra.mxu0 0.0
    %857 = vmatprep.subr.mxu0 0.0
    %858 = vmatpush1.msra.mxu0 0.0
    %859 = vmatprep.subr.mxu0 0.0
    %860 = vmatpush1.msra.mxu0 0.0
    %861 = vmatprep.subr.mxu0 0.0
    %862 = vmatpush1.msra.mxu0 0.0
    %863 = vmatprep.subr.mxu0 0.0
    %864 = vmatpush1.msra.mxu0 0.0
    %865 = vmatprep.subr.mxu0 0.0
    %866 = vmatpush1.msra.mxu0 0.0
    %867 = vmatprep.subr.mxu0 0.0
    %868 = vmatpush1.msra.mxu0 0.0
    %869 = vmatprep.subr.mxu0 0.0
    %870 = vmatpush1.msra.mxu0 0.0
    %871 = vmatprep.subr.mxu0 0.0
    %872 = vmatpush1.msra.mxu0 0.0
    %873 = vmatprep.subr.mxu0 0.0
    %874 = vmatpush1.msra.mxu0 0.0
    %875 = vmatprep.subr.mxu0 0.0
    %876 = vmatpush1.msra.mxu0 0.0
    %877 = vmatprep.subr.mxu0 0.0
    %878 = vmatpush1.msra.mxu0 0.0
    %879 = vmatprep.subr.mxu0 0.0
    %880 = vmatpush1.msra.mxu0 0.0
    %881 = vmatprep.subr.mxu0 0.0
    %882 = vmatpush1.msra.mxu0 0.0
    %883 = vmatprep.subr.mxu0 0.0
    %884 = vmatpush1.msra.mxu0 0.0
    %885 = vmatprep.subr.mxu0 0.0
    %886 = vmatpush1.msra.mxu0 0.0
    %887 = vmatprep.subr.mxu0 0.0
    %888 = vmatpush1.msra.mxu0 0.0
    %889 = vmatprep.subr.mxu0 0.0
    %890 = vmatpush1.msra.mxu0 0.0
    %891 = vmatprep.subr.mxu0 0.0
    %892 = vmatpush1.msra.mxu0 0.0
    %893 = vmatprep.subr.mxu0 0.0
    %894 = vmatpush1.msra.mxu0 0.0
    %895 = vmatprep.subr.mxu0 0.0
    %896 = vmatpush1.msra.mxu0 0.0
    %897 = vmatprep.subr.mxu0 0.0
    %898 = vmatpush1.msra.mxu0 0.0
    %899 = vmatprep.mubr.f32.mxu0 0.0
    %v900 = vand.u32 %v514, 4294901760
    %901 = vmatmul.mubr.f32.gmra.mrb[0].mxu0 %v900
    %v902 = vpop.f32.mrb[0].mxu0
    %v903 = vadd.f32 %v826, %v902
    %v904 = vpop.f32.mrb[0].mxu0
    %905 = vdwg.mxu0
    %906 = vmatprep.subr.mxu0 0.0
    %v907 = vand.u32 %v44, 4294901760
    %908 = vmatpush1.msra.mxu0 %v907
    %909 = vmatprep.subr.mxu0 0.0
    %v910 = vand.u32 %v518, 4294901760
    %911 = vmatpush1.msra.mxu0 %v910
    %912 = vmatprep.subr.mxu0 0.0
    %913 = vmatpush1.msra.mxu0 0.0
    %914 = vmatprep.subr.mxu0 0.0
    %915 = vmatpush1.msra.mxu0 0.0
    %916 = vmatprep.subr.mxu0 0.0
    %917 = vmatpush1.msra.mxu0 0.0
    %918 = vmatprep.subr.mxu0 0.0
    %919 = vmatpush1.msra.mxu0 0.0
    %920 = vmatprep.subr.mxu0 0.0
    %921 = vmatpush1.msra.mxu0 0.0
    %922 = vmatprep.subr.mxu0 0.0
    %923 = vmatpush1.msra.mxu0 0.0
    %924 = vmatprep.subr.mxu0 0.0
    %925 = vmatpush1.msra.mxu0 0.0
    %926 = vmatprep.subr.mxu0 0.0
    %927 = vmatpush1.msra.mxu0 0.0
    %928 = vmatprep.subr.mxu0 0.0
    %929 = vmatpush1.msra.mxu0 0.0
    %930 = vmatprep.subr.mxu0 0.0
    %931 = vmatpush1.msra.mxu0 0.0
    %932 = vmatprep.subr.mxu0 0.0
    %933 = vmatpush1.msra.mxu0 0.0
    %934 = vmatprep.subr.mxu0 0.0
    %935 = vmatpush1.msra.mxu0 0.0
    %936 = vmatprep.subr.mxu0 0.0
    %937 = vmatpush1.msra.mxu0 0.0
    %938 = vmatprep.subr.mxu0 0.0
    %939 = vmatpush1.msra.mxu0 0.0
    %940 = vmatprep.subr.mxu0 0.0
    %941 = vmatpush1.msra.mxu0 0.0
    %942 = vmatprep.subr.mxu0 0.0
    %943 = vmatpush1.msra.mxu0 0.0
    %944 = vmatprep.subr.mxu0 0.0
    %945 = vmatpush1.msra.mxu0 0.0
    %946 = vmatprep.subr.mxu0 0.0
    %947 = vmatpush1.msra.mxu0 0.0
    %948 = vmatprep.subr.mxu0 0.0
    %949 = vmatpush1.msra.mxu0 0.0
    %950 = vmatprep.subr.mxu0 0.0
    %951 = vmatpush1.msra.mxu0 0.0
    %952 = vmatprep.subr.mxu0 0.0
    %953 = vmatpush1.msra.mxu0 0.0
    %954 = vmatprep.subr.mxu0 0.0
    %955 = vmatpush1.msra.mxu0 0.0
    %956 = vmatprep.subr.mxu0 0.0
    %957 = vmatpush1.msra.mxu0 0.0
    %958 = vmatprep.subr.mxu0 0.0
    %959 = vmatpush1.msra.mxu0 0.0
    %960 = vmatprep.subr.mxu0 0.0
    %961 = vmatpush1.msra.mxu0 0.0
    %962 = vmatprep.subr.mxu0 0.0
    %963 = vmatpush1.msra.mxu0 0.0
    %964 = vmatprep.subr.mxu0 0.0
    %965 = vmatpush1.msra.mxu0 0.0
    %966 = vmatprep.subr.mxu0 0.0
    %967 = vmatpush1.msra.mxu0 0.0
    %968 = vmatprep.subr.mxu0 0.0
    %969 = vmatpush1.msra.mxu0 0.0
    %970 = vmatprep.subr.mxu0 0.0
    %971 = vmatpush1.msra.mxu0 0.0
    %972 = vmatprep.mubr.f32.mxu0 0.0
    %v973 = vand.u32 %v514, 4294901760
    %974 = vmatmul.mubr.f32.gmra.mrb[0].mxu0 %v973
    %v975 = vpop.f32.mrb[0].mxu0
    %v976 = vadd.f32 %v903, %v975
    %v977 = vpop.f32.mrb[0].mxu0
    %978 = vdwg.mxu0
    %vm979 = vcmask 114688
    %v980 = vsel %vm979, %v27, -inf
    %981 = vmax.xlane.f32.xlu0 %v980
    %v982 = vpop.xlane.xlu0 %981
    %v983 = vsub.f32 %v27, %v982
    %v984 = vmul.f32 %v983, 1.442695
    %v985 = vpow.pop %v984
    %v987 = vsel %vm512, %v985, 0
    %989 = vmatprep.subr.mxu0 0.0
    %v990 = vand.u32 %v44, 4294901760
    %991 = vmatpush1.msra.mxu0 %v990
    %992 = vmatprep.subr.mxu0 0.0
    %v993 = vand.u32 %v518, 4294901760
    %994 = vmatpush1.msra.mxu0 %v993
    %995 = vmatprep.subr.mxu0 0.0
    %996 = vmatpush1.msra.mxu0 0.0
    %997 = vmatprep.subr.mxu0 0.0
    %998 = vmatpush1.msra.mxu0 0.0
    %999 = vmatprep.subr.mxu0 0.0
    %1000 = vmatpush1.msra.mxu0 0.0
    %1001 = vmatprep.subr.mxu0 0.0
    %1002 = vmatpush1.msra.mxu0 0.0
    %1003 = vmatprep.subr.mxu0 0.0
    %1004 = vmatpush1.msra.mxu0 0.0
    %1005 = vmatprep.subr.mxu0 0.0
    %1006 = vmatpush1.msra.mxu0 0.0
    %1007 = vmatprep.subr.mxu0 0.0
    %1008 = vmatpush1.msra.mxu0 0.0
    %1009 = vmatprep.subr.mxu0 0.0
    %1010 = vmatpush1.msra.mxu0 0.0
    %1011 = vmatprep.subr.mxu0 0.0
    %1012 = vmatpush1.msra.mxu0 0.0
    %1013 = vmatprep.subr.mxu0 0.0
    %1014 = vmatpush1.msra.mxu0 0.0
    %1015 = vmatprep.subr.mxu0 0.0
    %1016 = vmatpush1.msra.mxu0 0.0
    %1017 = vmatprep.subr.mxu0 0.0
    %1018 = vmatpush1.msra.mxu0 0.0
    %1019 = vmatprep.subr.mxu0 0.0
    %1020 = vmatpush1.msra.mxu0 0.0
    %1021 = vmatprep.subr.mxu0 0.0
    %1022 = vmatpush1.msra.mxu0 0.0
    %1023 = vmatprep.subr.mxu0 0.0
    %1024 = vmatpush1.msra.mxu0 0.0
    %1025 = vmatprep.subr.mxu0 0.0
    %1026 = vmatpush1.msra.mxu0 0.0
    %1027 = vmatprep.subr.mxu0 0.0
    %1028 = vmatpush1.msra.mxu0 0.0
    %1029 = vmatprep.subr.mxu0 0.0
    %1030 = vmatpush1.msra.mxu0 0.0
    %1031 = vmatprep.subr.mxu0 0.0
    %1032 = vmatpush1.msra.mxu0 0.0
    %1033 = vmatprep.subr.mxu0 0.0
    %1034 = vmatpush1.msra.mxu0 0.0
    %1035 = vmatprep.subr.mxu0 0.0
    %1036 = vmatpush1.msra.mxu0 0.0
    %1037 = vmatprep.subr.mxu0 0.0
    %1038 = vmatpush1.msra.mxu0 0.0
    %1039 = vmatprep.subr.mxu0 0.0
    %1040 = vmatpush1.msra.mxu0 0.0
    %1041 = vmatprep.subr.mxu0 0.0
    %1042 = vmatpush1.msra.mxu0 0.0
    %1043 = vmatprep.subr.mxu0 0.0
    %1044 = vmatpush1.msra.mxu0 0.0
    %1045 = vmatprep.subr.mxu0 0.0
    %1046 = vmatpush1.msra.mxu0 0.0
    %1047 = vmatprep.subr.mxu0 0.0
    %1048 = vmatpush1.msra.mxu0 0.0
    %1049 = vmatprep.subr.mxu0 0.0
    %1050 = vmatpush1.msra.mxu0 0.0
    %1051 = vmatprep.subr.mxu0 0.0
    %1052 = vmatpush1.msra.mxu0 0.0
    %1053 = vmatprep.subr.mxu0 0.0
    %1054 = vmatpush1.msra.mxu0 0.0
    %1055 = vmatprep.mubr.f32.mxu0 0.0
    %v1056 = vand.u32 %v987, 4294901760
    %v1057 = vsub.f32 %v987, %v1056
    %v1058 = vand.u32 %v1057, 4294901760
    %v1059 = vsub.f32 %v1057, %v1058
    %v1060 = vand.u32 %v1059, 4294901760
    %1061 = vmatmul.mubr.f32.gmra.mrb[0].mxu0 %v1060
    %v1062 = vpop.f32.mrb[0].mxu0
    %v1063 = vadd.f32 0.0, %v1062
    %v1064 = vpop.f32.mrb[0].mxu0
    %1065 = vdwg.mxu0
    %1066 = vmatprep.subr.mxu0 0.0
    %v1067 = vand.u32 %v44, 4294901760
    %v1068 = vsub.f32 %v44, %v1067
    %v1069 = vand.u32 %v1068, 4294901760
    %v1070 = vsub.f32 %v1068, %v1069
    %v1071 = vand.u32 %v1070, 4294901760
    %1072 = vmatpush1.msra.mxu0 %v1071
    %1073 = vmatprep.subr.mxu0 0.0
    %v1074 = vand.u32 %v518, 4294901760
    %v1075 = vsub.f32 %v518, %v1074
    %v1076 = vand.u32 %v1075, 4294901760
    %v1077 = vsub.f32 %v1075, %v1076
    %v1078 = vand.u32 %v1077, 4294901760
    %1079 = vmatpush1.msra.mxu0 %v1078
    %1080 = vmatprep.subr.mxu0 0.0
    %1081 = vmatpush1.msra.mxu0 0.0
    %1082 = vmatprep.subr.mxu0 0.0
    %1083 = vmatpush1.msra.mxu0 0.0
    %1084 = vmatprep.subr.mxu0 0.0
    %1085 = vmatpush1.msra.mxu0 0.0
    %1086 = vmatprep.subr.mxu0 0.0
    %1087 = vmatpush1.msra.mxu0 0.0
    %1088 = vmatprep.subr.mxu0 0.0
    %1089 = vmatpush1.msra.mxu0 0.0
    %1090 = vmatprep.subr.mxu0 0.0
    %1091 = vmatpush1.msra.mxu0 0.0
    %1092 = vmatprep.subr.mxu0 0.0
    %1093 = vmatpush1.msra.mxu0 0.0
    %1094 = vmatprep.subr.mxu0 0.0
    %1095 = vmatpush1.msra.mxu0 0.0
    %1096 = vmatprep.subr.mxu0 0.0
    %1097 = vmatpush1.msra.mxu0 0.0
    %1098 = vmatprep.subr.mxu0 0.0
    %1099 = vmatpush1.msra.mxu0 0.0
    %1100 = vmatprep.subr.mxu0 0.0
    %1101 = vmatpush1.msra.mxu0 0.0
    %1102 = vmatprep.subr.mxu0 0.0
    %1103 = vmatpush1.msra.mxu0 0.0
    %1104 = vmatprep.subr.mxu0 0.0
    %1105 = vmatpush1.msra.mxu0 0.0
    %1106 = vmatprep.subr.mxu0 0.0
    %1107 = vmatpush1.msra.mxu0 0.0
    %1108 = vmatprep.subr.mxu0 0.0
    %1109 = vmatpush1.msra.mxu0 0.0
    %1110 = vmatprep.subr.mxu0 0.0
    %1111 = vmatpush1.msra.mxu0 0.0
    %1112 = vmatprep.subr.mxu0 0.0
    %1113 = vmatpush1.msra.mxu0 0.0
    %1114 = vmatprep.subr.mxu0 0.0
    %1115 = vmatpush1.msra.mxu0 0.0
    %1116 = vmatprep.subr.mxu0 0.0
    %1117 = vmatpush1.msra.mxu0 0.0
    %1118 = vmatprep.subr.mxu0 0.0
    %1119 = vmatpush1.msra.mxu0 0.0
    %1120 = vmatprep.subr.mxu0 0.0
    %1121 = vmatpush1.msra.mxu0 0.0
    %1122 = vmatprep.subr.mxu0 0.0
    %1123 = vmatpush1.msra.mxu0 0.0
    %1124 = vmatprep.subr.mxu0 0.0
    %1125 = vmatpush1.msra.mxu0 0.0
    %1126 = vmatprep.subr.mxu0 0.0
    %1127 = vmatpush1.msra.mxu0 0.0
    %1128 = vmatprep.subr.mxu0 0.0
    %1129 = vmatpush1.msra.mxu0 0.0
    %1130 = vmatprep.subr.mxu0 0.0
    %1131 = vmatpush1.msra.mxu0 0.0
    %1132 = vmatprep.subr.mxu0 0.0
    %1133 = vmatpush1.msra.mxu0 0.0
    %1134 = vmatprep.subr.mxu0 0.0
    %1135 = vmatpush1.msra.mxu0 0.0
    %1136 = vmatprep.subr.mxu0 0.0
    %1137 = vmatpush1.msra.mxu0 0.0
    %1138 = vmatprep.subr.mxu0 0.0
    %1139 = vmatpush1.msra.mxu0 0.0
    %1140 = vmatprep.mubr.f32.mxu0 0.0
    %v1141 = vand.u32 %v987, 4294901760
    %1142 = vmatmul.mubr.f32.gmra.mrb[0].mxu0 %v1141
    %v1143 = vpop.f32.mrb[0].mxu0
    %v1144 = vadd.f32 %v1063, %v1143
    %v1145 = vpop.f32.mrb[0].mxu0
    %1146 = vdwg.mxu0
    %1147 = vmatprep.subr.mxu0 0.0
    %v1148 = vand.u32 %v44, 4294901760
    %v1149 = vsub.f32 %v44, %v1148
    %1150 = vmatpush1.msra.mxu0 %v1149
    %1151 = vmatprep.subr.mxu0 0.0
    %v1152 = vand.u32 %v518, 4294901760
    %v1153 = vsub.f32 %v518, %v1152
    %1154 = vmatpush1.msra.mxu0 %v1153
    %1155 = vmatprep.subr.mxu0 0.0
    %1156 = vmatpush1.msra.mxu0 0.0
    %1157 = vmatprep.subr.mxu0 0.0
    %1158 = vmatpush1.msra.mxu0 0.0
    %1159 = vmatprep.subr.mxu0 0.0
    %1160 = vmatpush1.msra.mxu0 0.0
    %1161 = vmatprep.subr.mxu0 0.0
    %1162 = vmatpush1.msra.mxu0 0.0
    %1163 = vmatprep.subr.mxu0 0.0
    %1164 = vmatpush1.msra.mxu0 0.0
    %1165 = vmatprep.subr.mxu0 0.0
    %1166 = vmatpush1.msra.mxu0 0.0
    %1167 = vmatprep.subr.mxu0 0.0
    %1168 = vmatpush1.msra.mxu0 0.0
    %1169 = vmatprep.subr.mxu0 0.0
    %1170 = vmatpush1.msra.mxu0 0.0
    %1171 = vmatprep.subr.mxu0 0.0
    %1172 = vmatpush1.msra.mxu0 0.0
    %1173 = vmatprep.subr.mxu0 0.0
    %1174 = vmatpush1.msra.mxu0 0.0
    %1175 = vmatprep.subr.mxu0 0.0
    %1176 = vmatpush1.msra.mxu0 0.0
    %1177 = vmatprep.subr.mxu0 0.0
    %1178 = vmatpush1.msra.mxu0 0.0
    %1179 = vmatprep.subr.mxu0 0.0
    %1180 = vmatpush1.msra.mxu0 0.0
    %1181 = vmatprep.subr.mxu0 0.0
    %1182 = vmatpush1.msra.mxu0 0.0
    %1183 = vmatprep.subr.mxu0 0.0
    %1184 = vmatpush1.msra.mxu0 0.0
    %1185 = vmatprep.subr.mxu0 0.0
    %1186 = vmatpush1.msra.mxu0 0.0
    %1187 = vmatprep.subr.mxu0 0.0
    %1188 = vmatpush1.msra.mxu0 0.0
    %1189 = vmatprep.subr.mxu0 0.0
    %1190 = vmatpush1.msra.mxu0 0.0
    %1191 = vmatprep.subr.mxu0 0.0
    %1192 = vmatpush1.msra.mxu0 0.0
    %1193 = vmatprep.subr.mxu0 0.0
    %1194 = vmatpush1.msra.mxu0 0.0
    %1195 = vmatprep.subr.mxu0 0.0
    %1196 = vmatpush1.msra.mxu0 0.0
    %1197 = vmatprep.subr.mxu0 0.0
    %1198 = vmatpush1.msra.mxu0 0.0
    %1199 = vmatprep.subr.mxu0 0.0
    %1200 = vmatpush1.msra.mxu0 0.0
    %1201 = vmatprep.subr.mxu0 0.0
    %1202 = vmatpush1.msra.mxu0 0.0
    %1203 = vmatprep.subr.mxu0 0.0
    %1204 = vmatpush1.msra.mxu0 0.0
    %1205 = vmatprep.subr.mxu0 0.0
    %1206 = vmatpush1.msra.mxu0 0.0
    %1207 = vmatprep.subr.mxu0 0.0
    %1208 = vmatpush1.msra.mxu0 0.0
    %1209 = vmatprep.subr.mxu0 0.0
    %1210 = vmatpush1.msra.mxu0 0.0
    %1211 = vmatprep.subr.mxu0 0.0
    %1212 = vmatpush1.msra.mxu0 0.0
    %1213 = vmatprep.subr.mxu0 0.0
    %1214 = vmatpush1.msra.mxu0 0.0
    %1215 = vmatprep.mubr.f32.mxu0 0.0
    %v1216 = vand.u32 %v987, 4294901760
    %v1217 = vsub.f32 %v987, %v1216
    %1218 = vmatmul.mubr.f32.gmra.mrb[0].mxu0 %v1217
    %v1219 = vpop.f32.mrb[0].mxu0
    %v1220 = vadd.f32 %v1144, %v1219
    %v1221 = vpop.f32.mrb[0].mxu0
    %1222 = vdwg.mxu0
    %1223 = vmatprep.subr.mxu0 0.0
    %v1224 = vand.u32 %v44, 4294901760
    %1225 = vmatpush1.msra.mxu0 %v1224
    %1226 = vmatprep.subr.mxu0 0.0
    %v1227 = vand.u32 %v518, 4294901760
    %1228 = vmatpush1.msra.mxu0 %v1227
    %1229 = vmatprep.subr.mxu0 0.0
    %1230 = vmatpush1.msra.mxu0 0.0
    %1231 = vmatprep.subr.mxu0 0.0
    %1232 = vmatpush1.msra.mxu0 0.0
    %1233 = vmatprep.subr.mxu0 0.0
    %1234 = vmatpush1.msra.mxu0 0.0
    %1235 = vmatprep.subr.mxu0 0.0
    %1236 = vmatpush1.msra.mxu0 0.0
    %1237 = vmatprep.subr.mxu0 0.0
    %1238 = vmatpush1.msra.mxu0 0.0
    %1239 = vmatprep.subr.mxu0 0.0
    %1240 = vmatpush1.msra.mxu0 0.0
    %1241 = vmatprep.subr.mxu0 0.0
    %1242 = vmatpush1.msra.mxu0 0.0
    %1243 = vmatprep.subr.mxu0 0.0
    %1244 = vmatpush1.msra.mxu0 0.0
    %1245 = vmatprep.subr.mxu0 0.0
    %1246 = vmatpush1.msra.mxu0 0.0
    %1247 = vmatprep.subr.mxu0 0.0
    %1248 = vmatpush1.msra.mxu0 0.0
    %1249 = vmatprep.subr.mxu0 0.0
    %1250 = vmatpush1.msra.mxu0 0.0
    %1251 = vmatprep.subr.mxu0 0.0
    %1252 = vmatpush1.msra.mxu0 0.0
    %1253 = vmatprep.subr.mxu0 0.0
    %1254 = vmatpush1.msra.mxu0 0.0
    %1255 = vmatprep.subr.mxu0 0.0
    %1256 = vmatpush1.msra.mxu0 0.0
    %1257 = vmatprep.subr.mxu0 0.0
    %1258 = vmatpush1.msra.mxu0 0.0
    %1259 = vmatprep.subr.mxu0 0.0
    %1260 = vmatpush1.msra.mxu0 0.0
    %1261 = vmatprep.subr.mxu0 0.0
    %1262 = vmatpush1.msra.mxu0 0.0
    %1263 = vmatprep.subr.mxu0 0.0
    %1264 = vmatpush1.msra.mxu0 0.0
    %1265 = vmatprep.subr.mxu0 0.0
    %1266 = vmatpush1.msra.mxu0 0.0
    %1267 = vmatprep.subr.mxu0 0.0
    %1268 = vmatpush1.msra.mxu0 0.0
    %1269 = vmatprep.subr.mxu0 0.0
    %1270 = vmatpush1.msra.mxu0 0.0
    %1271 = vmatprep.subr.mxu0 0.0
    %1272 = vmatpush1.msra.mxu0 0.0
    %1273 = vmatprep.subr.mxu0 0.0
    %1274 = vmatpush1.msra.mxu0 0.0
    %1275 = vmatprep.subr.mxu0 0.0
    %1276 = vmatpush1.msra.mxu0 0.0
    %1277 = vmatprep.subr.mxu0 0.0
    %1278 = vmatpush1.msra.mxu0 0.0
    %1279 = vmatprep.subr.mxu0 0.0
    %1280 = vmatpush1.msra.mxu0 0.0
    %1281 = vmatprep.subr.mxu0 0.0
    %1282 = vmatpush1.msra.mxu0 0.0
    %1283 = vmatprep.subr.mxu0 0.0
    %1284 = vmatpush1.msra.mxu0 0.0
    %1285 = vmatprep.subr.mxu0 0.0
    %1286 = vmatpush1.msra.mxu0 0.0
    %1287 = vmatprep.subr.mxu0 0.0
    %1288 = vmatpush1.msra.mxu0 0.0
    %1289 = vmatprep.mubr.f32.mxu0 0.0
    %v1290 = vand.u32 %v987, 4294901760
    %v1291 = vsub.f32 %v987, %v1290
    %v1292 = vand.u32 %v1291, 4294901760
    %1293 = vmatmul.mubr.f32.gmra.mrb[0].mxu0 %v1292
    %v1294 = vpop.f32.mrb[0].mxu0
    %v1295 = vadd.f32 %v1220, %v1294
    %v1296 = vpop.f32.mrb[0].mxu0
    %1297 = vdwg.mxu0
    %1298 = vmatprep.subr.mxu0 0.0
    %v1299 = vand.u32 %v44, 4294901760
    %v1300 = vsub.f32 %v44, %v1299
    %v1301 = vand.u32 %v1300, 4294901760
    %1302 = vmatpush1.msra.mxu0 %v1301
    %1303 = vmatprep.subr.mxu0 0.0
    %v1304 = vand.u32 %v518, 4294901760
    %v1305 = vsub.f32 %v518, %v1304
    %v1306 = vand.u32 %v1305, 4294901760
    %1307 = vmatpush1.msra.mxu0 %v1306
    %1308 = vmatprep.subr.mxu0 0.0
    %1309 = vmatpush1.msra.mxu0 0.0
    %1310 = vmatprep.subr.mxu0 0.0
    %1311 = vmatpush1.msra.mxu0 0.0
    %1312 = vmatprep.subr.mxu0 0.0
    %1313 = vmatpush1.msra.mxu0 0.0
    %1314 = vmatprep.subr.mxu0 0.0
    %1315 = vmatpush1.msra.mxu0 0.0
    %1316 = vmatprep.subr.mxu0 0.0
    %1317 = vmatpush1.msra.mxu0 0.0
    %1318 = vmatprep.subr.mxu0 0.0
    %1319 = vmatpush1.msra.mxu0 0.0
    %1320 = vmatprep.subr.mxu0 0.0
    %1321 = vmatpush1.msra.mxu0 0.0
    %1322 = vmatprep.subr.mxu0 0.0
    %1323 = vmatpush1.msra.mxu0 0.0
    %1324 = vmatprep.subr.mxu0 0.0
    %1325 = vmatpush1.msra.mxu0 0.0
    %1326 = vmatprep.subr.mxu0 0.0
    %1327 = vmatpush1.msra.mxu0 0.0
    %1328 = vmatprep.subr.mxu0 0.0
    %1329 = vmatpush1.msra.mxu0 0.0
    %1330 = vmatprep.subr.mxu0 0.0
    %1331 = vmatpush1.msra.mxu0 0.0
    %1332 = vmatprep.subr.mxu0 0.0
    %1333 = vmatpush1.msra.mxu0 0.0
    %1334 = vmatprep.subr.mxu0 0.0
    %1335 = vmatpush1.msra.mxu0 0.0
    %1336 = vmatprep.subr.mxu0 0.0
    %1337 = vmatpush1.msra.mxu0 0.0
    %1338 = vmatprep.subr.mxu0 0.0
    %1339 = vmatpush1.msra.mxu0 0.0
    %1340 = vmatprep.subr.mxu0 0.0
    %1341 = vmatpush1.msra.mxu0 0.0
    %1342 = vmatprep.subr.mxu0 0.0
    %1343 = vmatpush1.msra.mxu0 0.0
    %1344 = vmatprep.subr.mxu0 0.0
    %1345 = vmatpush1.msra.mxu0 0.0
    %1346 = vmatprep.subr.mxu0 0.0
    %1347 = vmatpush1.msra.mxu0 0.0
    %1348 = vmatprep.subr.mxu0 0.0
    %1349 = vmatpush1.msra.mxu0 0.0
    %1350 = vmatprep.subr.mxu0 0.0
    %1351 = vmatpush1.msra.mxu0 0.0
    %1352 = vmatprep.subr.mxu0 0.0
    %1353 = vmatpush1.msra.mxu0 0.0
    %1354 = vmatprep.subr.mxu0 0.0
    %1355 = vmatpush1.msra.mxu0 0.0
    %1356 = vmatprep.subr.mxu0 0.0
    %1357 = vmatpush1.msra.mxu0 0.0
    %1358 = vmatprep.subr.mxu0 0.0
    %1359 = vmatpush1.msra.mxu0 0.0
    %1360 = vmatprep.subr.mxu0 0.0
    %1361 = vmatpush1.msra.mxu0 0.0
    %1362 = vmatprep.subr.mxu0 0.0
    %1363 = vmatpush1.msra.mxu0 0.0
    %1364 = vmatprep.subr.mxu0 0.0
    %1365 = vmatpush1.msra.mxu0 0.0
    %1366 = vmatprep.subr.mxu0 0.0
    %1367 = vmatpush1.msra.mxu0 0.0
    %1368 = vmatprep.mubr.f32.mxu0 0.0
    %v1369 = vand.u32 %v987, 4294901760
    %1370 = vmatmul.mubr.f32.gmra.mrb[0].mxu0 %v1369
    %v1371 = vpop.f32.mrb[0].mxu0
    %v1372 = vadd.f32 %v1295, %v1371
    %v1373 = vpop.f32.mrb[0].mxu0
    %1374 = vdwg.mxu0
    %1375 = vmatprep.subr.mxu0 0.0
    %v1376 = vand.u32 %v44, 4294901760
    %1377 = vmatpush1.msra.mxu0 %v1376
    %1378 = vmatprep.subr.mxu0 0.0
    %v1379 = vand.u32 %v518, 4294901760
    %1380 = vmatpush1.msra.mxu0 %v1379
    %1381 = vmatprep.subr.mxu0 0.0
    %1382 = vmatpush1.msra.mxu0 0.0
    %1383 = vmatprep.subr.mxu0 0.0
    %1384 = vmatpush1.msra.mxu0 0.0
    %1385 = vmatprep.subr.mxu0 0.0
    %1386 = vmatpush1.msra.mxu0 0.0
    %1387 = vmatprep.subr.mxu0 0.0
    %1388 = vmatpush1.msra.mxu0 0.0
    %1389 = vmatprep.subr.mxu0 0.0
    %1390 = vmatpush1.msra.mxu0 0.0
    %1391 = vmatprep.subr.mxu0 0.0
    %1392 = vmatpush1.msra.mxu0 0.0
    %1393 = vmatprep.subr.mxu0 0.0
    %1394 = vmatpush1.msra.mxu0 0.0
    %1395 = vmatprep.subr.mxu0 0.0
    %1396 = vmatpush1.msra.mxu0 0.0
    %1397 = vmatprep.subr.mxu0 0.0
    %1398 = vmatpush1.msra.mxu0 0.0
    %1399 = vmatprep.subr.mxu0 0.0
    %1400 = vmatpush1.msra.mxu0 0.0
    %1401 = vmatprep.subr.mxu0 0.0
    %1402 = vmatpush1.msra.mxu0 0.0
    %1403 = vmatprep.subr.mxu0 0.0
    %1404 = vmatpush1.msra.mxu0 0.0
    %1405 = vmatprep.subr.mxu0 0.0
    %1406 = vmatpush1.msra.mxu0 0.0
    %1407 = vmatprep.subr.mxu0 0.0
    %1408 = vmatpush1.msra.mxu0 0.0
    %1409 = vmatprep.subr.mxu0 0.0
    %1410 = vmatpush1.msra.mxu0 0.0
    %1411 = vmatprep.subr.mxu0 0.0
    %1412 = vmatpush1.msra.mxu0 0.0
    %1413 = vmatprep.subr.mxu0 0.0
    %1414 = vmatpush1.msra.mxu0 0.0
    %1415 = vmatprep.subr.mxu0 0.0
    %1416 = vmatpush1.msra.mxu0 0.0
    %1417 = vmatprep.subr.mxu0 0.0
    %1418 = vmatpush1.msra.mxu0 0.0
    %1419 = vmatprep.subr.mxu0 0.0
    %1420 = vmatpush1.msra.mxu0 0.0
    %1421 = vmatprep.subr.mxu0 0.0
    %1422 = vmatpush1.msra.mxu0 0.0
    %1423 = vmatprep.subr.mxu0 0.0
    %1424 = vmatpush1.msra.mxu0 0.0
    %1425 = vmatprep.subr.mxu0 0.0
    %1426 = vmatpush1.msra.mxu0 0.0
    %1427 = vmatprep.subr.mxu0 0.0
    %1428 = vmatpush1.msra.mxu0 0.0
    %1429 = vmatprep.subr.mxu0 0.0
    %1430 = vmatpush1.msra.mxu0 0.0
    %1431 = vmatprep.subr.mxu0 0.0
    %1432 = vmatpush1.msra.mxu0 0.0
    %1433 = vmatprep.subr.mxu0 0.0
    %1434 = vmatpush1.msra.mxu0 0.0
    %1435 = vmatprep.subr.mxu0 0.0
    %1436 = vmatpush1.msra.mxu0 0.0
    %1437 = vmatprep.subr.mxu0 0.0
    %1438 = vmatpush1.msra.mxu0 0.0
    %1439 = vmatprep.subr.mxu0 0.0
    %1440 = vmatpush1.msra.mxu0 0.0
    %1441 = vmatprep.mubr.f32.mxu0 0.0
    %v1442 = vand.u32 %v987, 4294901760
    %1443 = vmatmul.mubr.f32.gmra.mrb[0].mxu0 %v1442
    %v1444 = vpop.f32.mrb[0].mxu0
    %v1445 = vadd.f32 %v1372, %v1444
    %v1446 = vpop.f32.mrb[0].mxu0
    %1447 = vdwg.mxu0
    %v1448 = vmax.f32 %v1445, 1e-37
    %v1449 = vlog2.pop %v1448
    %v1450 = vmul.f32 %v1449, 0.6931472
    %v1451 = vadd.f32 %v982, %v1450
    %v1452 = vmax.f32 %v1451, %v976
    %v1453 = vsub.f32 %v1452, %v976
    %v1454 = vsub.f32 %v976, %v1452
    %v1455 = vmul.f32 %v1454, 1.442695
    %v1456 = vpow.pop %v1455
    %v1457 = vstv 0
    %v1458 = vadd.s32 %v1457, %v30
    %vm1459 = vcmp.lt.s32.totalorder %v1458, 1
    %v1460 = vsel %vm1459, %v1453, 0.0
    %v1461 = vsel %vm1459, %v1456, 0.0
    %vm1462 = vcmask 32768
    %v1463 = vsel %vm1462, %v1460, 0.0
    %1464 = vadd.xlane.f32.xlu0 %v1463
    %v1465 = vpop.xlane.xlu0 %1464
    %v1466 = vrot.slane %v1465, 4
    %v1467 = vadd.f32 %v1465, %v1466
    %v1468 = vrot.slane %v1467, 2
    %v1469 = vadd.f32 %v1467, %v1468
    %v1470 = vrot.slane %v1469, 1
    %v1471 = vadd.f32 %v1469, %v1470
    %s1472 = vtos %v1471
    %v1473 = vstv %s1472
    %vm1474 = vcmask 0
    %1475 = vst.msk [vmem:[#allocation5] sm:$0x1] %vm1474, %v1473
    %v1476 = vsel %vm1462, %v1461, 0.0
    %1477 = vadd.xlane.f32.xlu0 %v1476
    %v1478 = vpop.xlane.xlu0 %1477
    %v1479 = vrot.slane %v1478, 4
    %v1480 = vadd.f32 %v1478, %v1479
    %v1481 = vrot.slane %v1480, 2
    %v1482 = vadd.f32 %v1480, %v1481
    %v1483 = vrot.slane %v1482, 1
    %v1484 = vadd.f32 %v1482, %v1483
    %s1485 = vtos %v1484
    %v1486 = vstv %s1485
    %1487 = vst.msk [vmem:[#allocation6] sm:$0x1] %vm1474, %v1486
    // Predicated region
    $region14: #{tpu_custom_call.1} parent=1 // pred_check
      _
    $region15: #{tpu_custom_call.1} parent=1 // pred_check_branch
      %1489 = sbr.rel (0) target = $region17
    $region16: #{tpu_custom_call.1} parent=1 // pred_region
      %s1491 = ssub.s32 16, 16
      %1492 = vsyncadd [#allocation4], %s1491
      %s1494 = sshll.u32 [#allocation5], 4
      %s1495 = int_to_ptr.vmem [resolvable:$true] %s1494
      %1497 = dma.vmem_to_hbm [thread:$0]  %s1495, 16, %s2, [#allocation4]
    $region17: #{tpu_custom_call.1} parent=1 // pred_fallthru
      _
    // Predicated region
    $region18: #{tpu_custom_call.1} parent=1 // pred_check
      _
    $region19: #{tpu_custom_call.1} parent=1 // pred_check_branch
      %1499 = sbr.rel (0) target = $region21
    $region20: #{tpu_custom_call.1} parent=1 // pred_region
      %s1501 = ssub.s32 16, 16
      %1502 = vsyncadd [#allocation7], %s1501
      %s1504 = sshll.u32 [#allocation6], 4
      %s1505 = int_to_ptr.vmem [resolvable:$true] %s1504
      %1507 = dma.vmem_to_hbm [thread:$0]  %s1505, 16, %s3, [#allocation7]
    $region21: #{tpu_custom_call.1} parent=1 // pred_fallthru
      _
    // Predicated region
    $region22: #{tpu_custom_call.1} parent=1 // pred_check
      _
    $region23: #{tpu_custom_call.1} parent=1 // pred_check_branch
      %1509 = sbr.rel (0) target = $region25
    $region24: #{tpu_custom_call.1} parent=1 // pred_region
      %1510 = dma.done [#allocation4], 16
    $region25: #{tpu_custom_call.1} parent=1 // pred_fallthru
      _
    // Predicated region
    $region26: #{tpu_custom_call.1} parent=1 // pred_check
      _
    $region27: #{tpu_custom_call.1} parent=1 // pred_check_branch
      %1512 = sbr.rel (0) target = $region29
    $region28: #{tpu_custom_call.1} parent=1 // pred_region
      %1513 = dma.done [#allocation7], 16
    $region29: #{tpu_custom_call.1} parent=1 // pred_fallthru
      _
    %1514 = vsyncpa [#allocation3], 1
    %1515 = vsyncpa [#allocation4], 1
    %1516 = vsyncpa [#allocation7], 1

</llo_original>
